<compile_context>
chip_gen: v6e
topology: v6e:2x2x1
jax: 0.10.0
libtpu: 0.0.40
codegen_flags: <defaults>
</compile_context>

<pallas_src>
import functools

import jax
import jax.numpy as jnp
from jax.experimental import pallas as pl
from jax.experimental.pallas import tpu as pltpu

H = 360          # true hidden width (PyTorch Linear(INPUT_SIZE, 360))
H_PAD = 384      # padded to a multiple of 128 (lane-dense latent stores)
O = 2            # true output width (Linear(360, 2))
O_PAD = 128      # padded to one full lane group


def _round_up(x, m):
    return ((x + m - 1) // m) * m


def _pick_batch_tile(batch, d_in):
    """Largest batch tile (multiple of 8, <=256) whose double-buffered
    x/latent/out tiles + resident weights fit in ~24 MiB of VMEM."""
    b8 = _round_up(batch, 8)
    budget = 24 * 1024 * 1024
    # Resident params (count x2 buffers to stay conservative).
    resident = 2 * (d_in * H_PAD * 2 + H_PAD * O_PAD * 2 + (H_PAD + O_PAD) * 4)
    # Per batch-row bytes across double-buffered tiles:
    #   x (bf16) + latent (f32) + out (f32), each x2 buffers.
    per_row = 2 * (d_in * 2 + H_PAD * 4 + O_PAD * 4)
    tb = 256
    while tb > 8 and resident + tb * per_row > budget:
        tb //= 2
    return min(tb, b8)


def _mlp_kernel(x_ref, w1_ref, b1_ref, w2_ref, b2_ref, out_ref, latent_ref):
    # Layer 1: bf16 operands on the MXU, f32 accumulation.
    h = jnp.dot(x_ref[...], w1_ref[...], preferred_element_type=jnp.float32)
    # Bias add + ReLU in f32 on the VPU (valid on all TPU generations).
    h = jnp.maximum(h + b1_ref[...], 0.0)            # (TB, H_PAD)
    latent_ref[...] = h.astype(latent_ref.dtype)     # lane-dense (384 = 3*128)

    # Layer 2: cast hidden to bf16 for the MXU, accumulate in f32.
    o = jnp.dot(h.astype(w2_ref.dtype), w2_ref[...],
                preferred_element_type=jnp.float32)
    out_ref[...] = (o + b2_ref[...]).astype(out_ref.dtype)   # lane-dense (128)


@jax.jit
def mlp_forward(x_flat, w1p, b1p, w2p, b2p):
    """x_flat: (B, D_in) f32.
    w1p: (D_in, H_PAD) bf16, b1p: (1, H_PAD) f32,
    w2p: (H_PAD, O_PAD) bf16, b2p: (1, O_PAD) f32  (zero-padded).
    Returns (out (B, O) f32, latent (B, H) f32)."""
    B, D_in = x_flat.shape

    TB = _pick_batch_tile(B, D_in)
    B_pad = _round_up(B, TB)
    num_tiles = B_pad // TB

    # Zero-pad batch (only if needed) and narrow matmul operand to bf16.
    if B_pad == B:
        x_pad = x_flat.astype(jnp.bfloat16)
    else:
        x_pad = (jnp.zeros((B_pad, D_in), jnp.float32)
                 .at[:B].set(x_flat).astype(jnp.bfloat16))

    flops = 2 * B_pad * (D_in * H_PAD + H_PAD * O_PAD)
    bytes_accessed = (x_pad.size * 2 + w1p.size * 2 + w2p.size * 2
                      + b1p.size * 4 + b2p.size * 4
                      + B_pad * O_PAD * 4 + B_pad * H_PAD * 4)

    out_pad, latent_pad = pl.pallas_call(
        _mlp_kernel,
        grid=(num_tiles,),
        in_specs=[
            pl.BlockSpec((TB, D_in), lambda i: (i, 0)),      # x tile (batch-tiled)
            pl.BlockSpec((D_in, H_PAD), lambda i: (0, 0)),   # w1 (VMEM-resident)
            pl.BlockSpec((1, H_PAD), lambda i: (0, 0)),      # b1
            pl.BlockSpec((H_PAD, O_PAD), lambda i: (0, 0)),  # w2
            pl.BlockSpec((1, O_PAD), lambda i: (0, 0)),      # b2
        ],
        out_specs=(
            pl.BlockSpec((TB, O_PAD), lambda i: (i, 0)),
            pl.BlockSpec((TB, H_PAD), lambda i: (i, 0)),
        ),
        out_shape=(
            jax.ShapeDtypeStruct((B_pad, O_PAD), jnp.float32),
            jax.ShapeDtypeStruct((B_pad, H_PAD), jnp.float32),
        ),
        compiler_params=pltpu.CompilerParams(
            dimension_semantics=("parallel",),
        ),
        cost_estimate=pl.CostEstimate(
            flops=flops, transcendentals=0, bytes_accessed=bytes_accessed),
    )(x_pad, w1p, b1p, w2p, b2p)

    # Strip batch / feature padding (padded columns are exactly zero).
    return out_pad[:B, :O], latent_pad[:B, :H]


class MLPModelPallas:
    """Deterministic-parameter re-implementation of MLPModel."""

    def __init__(self, input_size, key):
        layer_widths = [input_size, H, O]
        self.params = []          # true f32 params, (fan_in, fan_out) layout
        for i in range(len(layer_widths) - 1):
            fan_in, fan_out = layer_widths[i], layer_widths[i + 1]
            key, kw, kb = jax.random.split(key, 3)
            bound = 1.0 / jnp.sqrt(fan_in)
            w = jax.random.uniform(kw, (fan_in, fan_out), jnp.float32, -bound, bound)
            b = jax.random.uniform(kb, (1, fan_out), jnp.float32, -bound, bound)
            self.params.append((w, b))

        # Pre-pad + pre-cast kernel-side parameters once (not per call).
        (w1, b1), (w2, b2) = self.params
        d_in = w1.shape[0]
        w1p = jnp.zeros((d_in, H_PAD), jnp.float32).at[:, :H].set(w1)
        b1p = jnp.zeros((1, H_PAD), jnp.float32).at[:, :H].set(b1)
        w2p = jnp.zeros((H_PAD, O_PAD), jnp.float32).at[:H, :O].set(w2)
        b2p = jnp.zeros((1, O_PAD), jnp.float32).at[:, :O].set(b2)
        self.kernel_params = (w1p.astype(jnp.bfloat16), b1p,
                              w2p.astype(jnp.bfloat16), b2p)
        self.latent_space = None

    def forward(self, inputs):
        # inputs.view(inputs.size(0), -1)
        x = inputs.reshape(inputs.shape[0], -1).astype(jnp.float32)
        w1p, b1p, w2p, b2p = self.kernel_params
        out, latent = mlp_forward(x, w1p, b1p, w2p, b2p)
        self.latent_space = latent
        return out

    def get_latent_space(self):
        return self.latent_space


if __name__ == "__main__":
    key = jax.random.PRNGKey(0)
    k_param, k_x = jax.random.split(key)

    # Small NCHW-style input: (batch=2, channels=4, H=16, W=16) -> flatten to 1024
    x = jax.random.normal(k_x, (2, 4, 16, 16), dtype=jnp.float32)
    input_size = 4 * 16 * 16

    model = MLPModelPallas(input_size, k_param)
    out = model.forward(x)
    latent = model.get_latent_space()

    jax.block_until_ready(out)
    jax.block_until_ready(latent)

    # Reference check in plain f32 JAX (kernel uses bf16 matmul operands with
    # f32 accumulation, so tolerances are loosened accordingly).
    (w1, b1), (w2, b2) = model.params
    x_flat = x.reshape(x.shape[0], -1)
    h_ref = jnp.maximum(x_flat @ w1 + b1, 0.0)
    out_ref = h_ref @ w2 + b2

    assert out.shape == (2, 2)
    assert latent.shape == (2, 360)
    assert jnp.allclose(out, out_ref, atol=3e-2, rtol=3e-2)
    assert jnp.allclose(latent, h_ref, atol=3e-2, rtol=3e-2)

    print("KERNEL_OK")
</pallas_src>

<mosaic_0001>
module attributes {stable_mosaic.version = 11 : i64} {
  func.func @_mlp_kernel(%arg0: i32, %arg1: memref<8x1024xbf16, #tpu.memory_space<vmem>>, %arg2: memref<1024x384xbf16, #tpu.memory_space<vmem>>, %arg3: memref<1x384xf32, #tpu.memory_space<vmem>>, %arg4: memref<384x128xbf16, #tpu.memory_space<vmem>>, %arg5: memref<1x128xf32, #tpu.memory_space<vmem>>, %arg6: memref<8x128xf32, #tpu.memory_space<vmem>>, %arg7: memref<8x384xf32, #tpu.memory_space<vmem>>) attributes {dimension_semantics = [#tpu.dimension_semantics<parallel>], iteration_bounds = array<i64: 1>, scalar_prefetch = 0 : i64, scratch_operands = 0 : i64, tpu.core_type = #tpu.core_type<tc>, window_params = [{transform_indices = @transform_0, window_bounds = array<i64: 8, 1024>}, {pipeline_mode = #tpu.pipeline_mode<synchronous>, transform_indices = @transform_1, window_bounds = array<i64: 1024, 384>}, {pipeline_mode = #tpu.pipeline_mode<synchronous>, transform_indices = @transform_2, window_bounds = array<i64: 1, 384>}, {pipeline_mode = #tpu.pipeline_mode<synchronous>, transform_indices = @transform_3, window_bounds = array<i64: 384, 128>}, {pipeline_mode = #tpu.pipeline_mode<synchronous>, transform_indices = @transform_4, window_bounds = array<i64: 1, 128>}, {transform_indices = @transform_5, window_bounds = array<i64: 8, 128>}, {transform_indices = @transform_6, window_bounds = array<i64: 8, 384>}]} {
    %c0 = arith.constant 0 : index
    %c0_0 = arith.constant 0 : index
    %0 = vector.load %arg1[%c0, %c0_0] : memref<8x1024xbf16, #tpu.memory_space<vmem>>, vector<8x1024xbf16>
    %c0_1 = arith.constant 0 : index
    %c0_2 = arith.constant 0 : index
    %1 = vector.load %arg2[%c0_1, %c0_2] : memref<1024x384xbf16, #tpu.memory_space<vmem>>, vector<1024x384xbf16>
    %cst = arith.constant dense<0.000000e+00> : vector<8x384xf32>
    %2 = tpu.matmul %0, %1, %cst {dimension_numbers = #tpu.dot_dimension_numbers<[1], [0], [0], [1], [0, 0, 1, 1], [], []>} : vector<8x1024xbf16>, vector<1024x384xbf16>, vector<8x384xf32> -> vector<8x384xf32>
    %c0_3 = arith.constant 0 : index
    %c0_4 = arith.constant 0 : index
    %3 = vector.load %arg3[%c0_3, %c0_4] : memref<1x384xf32, #tpu.memory_space<vmem>>, vector<1x384xf32>
    %4 = vector.broadcast %3 : vector<1x384xf32> to vector<8x384xf32>
    %5 = arith.addf %2, %4 : vector<8x384xf32>
    %cst_5 = arith.constant 0.000000e+00 : f32
    %6 = vector.broadcast %cst_5 : f32 to vector<8x384xf32>
    %7 = arith.maximumf %5, %6 : vector<8x384xf32>
    %c0_6 = arith.constant 0 : index
    %c0_7 = arith.constant 0 : index
    %8 = vector.load %arg7[%c0_6, %c0_7] : memref<8x384xf32, #tpu.memory_space<vmem>>, vector<8x384xf32>
    tpu.vector_store %arg7[%c0_6, %c0_7], %7 {strides = array<i32>} : memref<8x384xf32, #tpu.memory_space<vmem>>, vector<8x384xf32>,
    %9 = arith.truncf %7 : vector<8x384xf32> to vector<8x384xbf16>
    %c0_8 = arith.constant 0 : index
    %c0_9 = arith.constant 0 : index
    %10 = vector.load %arg4[%c0_8, %c0_9] : memref<384x128xbf16, #tpu.memory_space<vmem>>, vector<384x128xbf16>
    %cst_10 = arith.constant dense<0.000000e+00> : vector<8x128xf32>
    %11 = tpu.matmul %9, %10, %cst_10 {dimension_numbers = #tpu.dot_dimension_numbers<[1], [0], [0], [1], [0, 0, 1, 1], [], []>} : vector<8x384xbf16>, vector<384x128xbf16>, vector<8x128xf32> -> vector<8x128xf32>
    %c0_11 = arith.constant 0 : index
    %c0_12 = arith.constant 0 : index
    %12 = vector.load %arg5[%c0_11, %c0_12] : memref<1x128xf32, #tpu.memory_space<vmem>>, vector<1x128xf32>
    %13 = vector.broadcast %12 : vector<1x128xf32> to vector<8x128xf32>
    %14 = arith.addf %11, %13 : vector<8x128xf32>
    %c0_13 = arith.constant 0 : index
    %c0_14 = arith.constant 0 : index
    %15 = vector.load %arg6[%c0_13, %c0_14] : memref<8x128xf32, #tpu.memory_space<vmem>>, vector<8x128xf32>
    tpu.vector_store %arg6[%c0_13, %c0_14], %14 {strides = array<i32>} : memref<8x128xf32, #tpu.memory_space<vmem>>, vector<8x128xf32>,
    return
  }
  func.func @transform_0(%arg0: i32) -> (i32, i32) {
    %c0_i32 = arith.constant 0 : i32
    %c0_i32_0 = arith.constant 0 : i32
    return %arg0, %c0_i32 : i32, i32
  }
  func.func @transform_1(%arg0: i32) -> (i32, i32) {
    %c0_i32 = arith.constant 0 : i32
    %c0_i32_0 = arith.constant 0 : i32
    %c0_i32_1 = arith.constant 0 : i32
    return %c0_i32, %c0_i32_0 : i32, i32
  }
  func.func @transform_2(%arg0: i32) -> (i32, i32) {
    %c0_i32 = arith.constant 0 : i32
    %c0_i32_0 = arith.constant 0 : i32
    %c0_i32_1 = arith.constant 0 : i32
    return %c0_i32, %c0_i32_0 : i32, i32
  }
  func.func @transform_3(%arg0: i32) -> (i32, i32) {
    %c0_i32 = arith.constant 0 : i32
    %c0_i32_0 = arith.constant 0 : i32
    %c0_i32_1 = arith.constant 0 : i32
    return %c0_i32, %c0_i32_0 : i32, i32
  }
  func.func @transform_4(%arg0: i32) -> (i32, i32) {
    %c0_i32 = arith.constant 0 : i32
    %c0_i32_0 = arith.constant 0 : i32
    %c0_i32_1 = arith.constant 0 : i32
    return %c0_i32, %c0_i32_0 : i32, i32
  }
  func.func @transform_5(%arg0: i32) -> (i32, i32) {
    %c0_i32 = arith.constant 0 : i32
    %c0_i32_0 = arith.constant 0 : i32
    return %arg0, %c0_i32 : i32, i32
  }
  func.func @transform_6(%arg0: i32) -> (i32, i32) {
    %c0_i32 = arith.constant 0 : i32
    %c0_i32_0 = arith.constant 0 : i32
    return %arg0, %c0_i32 : i32, i32
  }
}

</mosaic_0001>

<llo_original>
// kernel: mlp_forward.1
$region0: #{mlp_forward.1}
  #allocation0 [shape = 'u32[]', space=smem, size = 0x4, offset = 0x4, fixed_abs, tag = 'smem constant byte address 0x4 - core index']
  #allocation1 [shape = 'u32[144,128]{1,0:T(1,128)}', space=vmem, size = 0x12000, scoped, tag = 'internal scratch']
  %s0 = inlined_call_operand.vmem [shape: bf16[8,1024], index: 0, kind: input, shape index: {}]
  %s1 = inlined_call_operand.hbm [shape: bf16[1024,384], index: 1, kind: input, shape index: {}]
  %s2 = inlined_call_operand.vmem [shape: f32[1,384], index: 2, kind: input, shape index: {}]
  %s3 = inlined_call_operand.hbm [shape: bf16[384,128], index: 3, kind: input, shape index: {}]
  %s4 = inlined_call_operand.vmem [shape: f32[1,128], index: 4, kind: input, shape index: {}]
  %s5 = inlined_call_operand.vmem [shape: f32[8,128], index: 5, kind: output, shape index: {0}]
  %s6 = inlined_call_operand.vmem [shape: f32[8,384], index: 6, kind: output, shape index: {1}]
  %7 = xla_tuple %s5, %s6
  %s8 = sld [smem:[#allocation0]]
  $region46: #{mlp_forward.1} parent=0
    _
  %s10 = ssub.s32 1, %s8
  %s11 = scalar_select 0, %s10, %s8
  $region1: #{mlp_forward.1} parent=0
    #allocation2 [shape = 'u8[786432]{0}', space=vmem, size = 0xc0000, scoped, tag = 'input window, operand 1, single buffered']
    #allocation3 [shape = 's32[1]{0}', space=sflag, size = 0x4, scoped, tag = 'scoped memory for mlp_forward.1']
    #allocation4 [shape = 'u8[98304]{0}', space=vmem, size = 0x18000, scoped, tag = 'input window, operand 3, single buffered']
    #allocation5 [shape = 's32[1]{0}', space=sflag, size = 0x4, scoped, tag = 'scoped memory for mlp_forward.1']
    %12 = vsyncpa [#allocation3], 0
    %13 = vsyncpa [#allocation5], 0
    // Predicated region
    $region2: #{mlp_forward.1} parent=1 // pred_check
      _
    $region3: #{mlp_forward.1} parent=1 // pred_check_branch
      %15 = sbr.rel (0) target = $region5
    $region4: #{mlp_forward.1} parent=1 // pred_region
      _
    $region5: #{mlp_forward.1} parent=1 // pred_fallthru
      _
    // Predicated region
    $region6: #{mlp_forward.1} parent=1 // pred_check
      _
    $region7: #{mlp_forward.1} parent=1 // pred_check_branch
      %17 = sbr.rel (0) target = $region9
    $region8: #{mlp_forward.1} parent=1 // pred_region
      %s19 = ssub.s32 24576, 24576
      %20 = vsyncadd [#allocation3], %s19
      %s21 = sshll.u32 [#allocation2], 4
      %s22 = int_to_ptr.vmem [resolvable:$true] %s21
      %27 = dma.hbm_to_vmem [thread:$0]  %s1, 24576, %s22, [#allocation3], 192, 192, 12
    $region9: #{mlp_forward.1} parent=1 // pred_fallthru
      _
    // Predicated region
    $region10: #{mlp_forward.1} parent=1 // pred_check
      _
    $region11: #{mlp_forward.1} parent=1 // pred_check_branch
      %29 = sbr.rel (0) target = $region13
    $region12: #{mlp_forward.1} parent=1 // pred_region
      _
    $region13: #{mlp_forward.1} parent=1 // pred_fallthru
      _
    // Predicated region
    $region14: #{mlp_forward.1} parent=1 // pred_check
      _
    $region15: #{mlp_forward.1} parent=1 // pred_check_branch
      %31 = sbr.rel (0) target = $region17
    $region16: #{mlp_forward.1} parent=1 // pred_region
      %s33 = ssub.s32 3072, 3072
      %34 = vsyncadd [#allocation5], %s33
      %s35 = sshll.u32 [#allocation4], 4
      %s36 = int_to_ptr.vmem [resolvable:$true] %s35
      %41 = dma.hbm_to_vmem [thread:$0]  %s3, 3072, %s36, [#allocation5], 64, 64, 4
    $region17: #{mlp_forward.1} parent=1 // pred_fallthru
      _
    // Predicated region
    $region18: #{mlp_forward.1} parent=1 // pred_check
      _
    $region19: #{mlp_forward.1} parent=1 // pred_check_branch
      %43 = sbr.rel (0) target = $region21
    $region20: #{mlp_forward.1} parent=1 // pred_region
      _
    $region21: #{mlp_forward.1} parent=1 // pred_fallthru
      _
    // Predicated region
    $region22: #{mlp_forward.1} parent=1 // pred_check
      _
    $region23: #{mlp_forward.1} parent=1 // pred_check_branch
      %45 = sbr.rel (0) target = $region25
    $region24: #{mlp_forward.1} parent=1 // pred_region
      %46 = dma.done [#allocation3], 24576
    $region25: #{mlp_forward.1} parent=1 // pred_fallthru
      _
    // Predicated region
    $region26: #{mlp_forward.1} parent=1 // pred_check
      _
    $region27: #{mlp_forward.1} parent=1 // pred_check_branch
      %48 = sbr.rel (0) target = $region29
    $region28: #{mlp_forward.1} parent=1 // pred_region
      %49 = dma.done [#allocation5], 3072
    $region29: #{mlp_forward.1} parent=1 // pred_fallthru
      _
    %v51 = vld [vmem:[%s0] sm:$0xff]
    %v52 = vld [vmem:[%s0 + $0x8] sm:$0xff]
    %v53 = vld [vmem:[%s0 + $0x10] sm:$0xff]
    %v54 = vld [vmem:[%s0 + $0x18] sm:$0xff]
    %v55 = vld [vmem:[#allocation2] sm:$0xff]
    %v56 = vld [vmem:[#allocation2 + $0x8] sm:$0xf]
    %v57 = vld [vmem:[#allocation2 + $0xc] sm:$0xff]
    %v58 = vld [vmem:[#allocation2 + $0x14] sm:$0xf]
    %v59 = vld [vmem:[#allocation2 + $0x18] sm:$0xff]
    %v60 = vld [vmem:[#allocation2 + $0x20] sm:$0xf]
    %v61 = vld [vmem:[#allocation2 + $0x24] sm:$0xff]
    %v62 = vld [vmem:[#allocation2 + $0x2c] sm:$0xf]
    %v63 = vld [vmem:[#allocation2 + $0x30] sm:$0xff]
    %v64 = vld [vmem:[#allocation2 + $0x38] sm:$0xf]
    %v65 = vld [vmem:[#allocation2 + $0x3c] sm:$0xff]
    %v66 = vld [vmem:[#allocation2 + $0x44] sm:$0xf]
    %v67 = vld [vmem:[#allocation2 + $0x48] sm:$0xff]
    %v68 = vld [vmem:[#allocation2 + $0x50] sm:$0xf]
    %v69 = vld [vmem:[#allocation2 + $0x54] sm:$0xff]
    %v70 = vld [vmem:[#allocation2 + $0x5c] sm:$0xf]
    %v71 = vld [vmem:[#allocation2 + $0x60] sm:$0xff]
    %v72 = vld [vmem:[#allocation2 + $0x68] sm:$0xf]
    %v73 = vld [vmem:[#allocation2 + $0x6c] sm:$0xff]
    %v74 = vld [vmem:[#allocation2 + $0x74] sm:$0xf]
    %v75 = vld [vmem:[#allocation2 + $0x78] sm:$0xff]
    %v76 = vld [vmem:[#allocation2 + $0x80] sm:$0xf]
    %v77 = vld [vmem:[#allocation2 + $0x84] sm:$0xff]
    %v78 = vld [vmem:[#allocation2 + $0x8c] sm:$0xf]
    %v79 = vld [vmem:[#allocation2 + $0x90] sm:$0xff]
    %v80 = vld [vmem:[#allocation2 + $0x98] sm:$0xf]
    %v81 = vld [vmem:[#allocation2 + $0x9c] sm:$0xff]
    %v82 = vld [vmem:[#allocation2 + $0xa4] sm:$0xf]
    %v83 = vld [vmem:[#allocation2 + $0xa8] sm:$0xff]
    %v84 = vld [vmem:[#allocation2 + $0xb0] sm:$0xf]
    %v85 = vld [vmem:[#allocation2 + $0xb4] sm:$0xff]
    %v86 = vld [vmem:[#allocation2 + $0xbc] sm:$0xf]
    %v87 = vld [vmem:[#allocation2 + $0xc0] sm:$0xff]
    %v88 = vld [vmem:[#allocation2 + $0xc8] sm:$0xf]
    %v89 = vld [vmem:[#allocation2 + $0xcc] sm:$0xff]
    %v90 = vld [vmem:[#allocation2 + $0xd4] sm:$0xf]
    %v91 = vld [vmem:[#allocation2 + $0xd8] sm:$0xff]
    %v92 = vld [vmem:[#allocation2 + $0xe0] sm:$0xf]
    %v93 = vld [vmem:[#allocation2 + $0xe4] sm:$0xff]
    %v94 = vld [vmem:[#allocation2 + $0xec] sm:$0xf]
    %v95 = vld [vmem:[#allocation2 + $0xf0] sm:$0xff]
    %v96 = vld [vmem:[#allocation2 + $0xf8] sm:$0xf]
    %v97 = vld [vmem:[#allocation2 + $0xfc] sm:$0xff]
    %v98 = vld [vmem:[#allocation2 + $0x104] sm:$0xf]
    %v99 = vld [vmem:[#allocation2 + $0x108] sm:$0xff]
    %v100 = vld [vmem:[#allocation2 + $0x110] sm:$0xf]
    %v101 = vld [vmem:[#allocation2 + $0x114] sm:$0xff]
    %v102 = vld [vmem:[#allocation2 + $0x11c] sm:$0xf]
    %v103 = vld [vmem:[#allocation2 + $0x120] sm:$0xff]
    %v104 = vld [vmem:[#allocation2 + $0x128] sm:$0xf]
    %v105 = vld [vmem:[#allocation2 + $0x12c] sm:$0xff]
    %v106 = vld [vmem:[#allocation2 + $0x134] sm:$0xf]
    %v107 = vld [vmem:[#allocation2 + $0x138] sm:$0xff]
    %v108 = vld [vmem:[#allocation2 + $0x140] sm:$0xf]
    %v109 = vld [vmem:[#allocation2 + $0x144] sm:$0xff]
    %v110 = vld [vmem:[#allocation2 + $0x14c] sm:$0xf]
    %v111 = vld [vmem:[#allocation2 + $0x150] sm:$0xff]
    %v112 = vld [vmem:[#allocation2 + $0x158] sm:$0xf]
    %v113 = vld [vmem:[#allocation2 + $0x15c] sm:$0xff]
    %v114 = vld [vmem:[#allocation2 + $0x164] sm:$0xf]
    %v115 = vld [vmem:[#allocation2 + $0x168] sm:$0xff]
    %v116 = vld [vmem:[#allocation2 + $0x170] sm:$0xf]
    %v117 = vld [vmem:[#allocation2 + $0x174] sm:$0xff]
    %v118 = vld [vmem:[#allocation2 + $0x17c] sm:$0xf]
    %v119 = vld [vmem:[#allocation2 + $0x180] sm:$0xff]
    %v120 = vld [vmem:[#allocation2 + $0x188] sm:$0xf]
    %v121 = vld [vmem:[#allocation2 + $0x18c] sm:$0xff]
    %v122 = vld [vmem:[#allocation2 + $0x194] sm:$0xf]
    %v123 = vld [vmem:[#allocation2 + $0x198] sm:$0xff]
    %v124 = vld [vmem:[#allocation2 + $0x1a0] sm:$0xf]
    %v125 = vld [vmem:[#allocation2 + $0x1a4] sm:$0xff]
    %v126 = vld [vmem:[#allocation2 + $0x1ac] sm:$0xf]
    %v127 = vld [vmem:[#allocation2 + $0x1b0] sm:$0xff]
    %v128 = vld [vmem:[#allocation2 + $0x1b8] sm:$0xf]
    %v129 = vld [vmem:[#allocation2 + $0x1bc] sm:$0xff]
    %v130 = vld [vmem:[#allocation2 + $0x1c4] sm:$0xf]
    %v131 = vld [vmem:[#allocation2 + $0x1c8] sm:$0xff]
    %v132 = vld [vmem:[#allocation2 + $0x1d0] sm:$0xf]
    %v133 = vld [vmem:[#allocation2 + $0x1d4] sm:$0xff]
    %v134 = vld [vmem:[#allocation2 + $0x1dc] sm:$0xf]
    %v135 = vld [vmem:[#allocation2 + $0x1e0] sm:$0xff]
    %v136 = vld [vmem:[#allocation2 + $0x1e8] sm:$0xf]
    %v137 = vld [vmem:[#allocation2 + $0x1ec] sm:$0xff]
    %v138 = vld [vmem:[#allocation2 + $0x1f4] sm:$0xf]
    %v139 = vld [vmem:[#allocation2 + $0x1f8] sm:$0xff]
    %v140 = vld [vmem:[#allocation2 + $0x200] sm:$0xf]
    %v141 = vld [vmem:[#allocation2 + $0x204] sm:$0xff]
    %v142 = vld [vmem:[#allocation2 + $0x20c] sm:$0xf]
    %v143 = vld [vmem:[#allocation2 + $0x210] sm:$0xff]
    %v144 = vld [vmem:[#allocation2 + $0x218] sm:$0xf]
    %v145 = vld [vmem:[#allocation2 + $0x21c] sm:$0xff]
    %v146 = vld [vmem:[#allocation2 + $0x224] sm:$0xf]
    %v147 = vld [vmem:[#allocation2 + $0x228] sm:$0xff]
    %v148 = vld [vmem:[#allocation2 + $0x230] sm:$0xf]
    %v149 = vld [vmem:[#allocation2 + $0x234] sm:$0xff]
    %v150 = vld [vmem:[#allocation2 + $0x23c] sm:$0xf]
    %v151 = vld [vmem:[#allocation2 + $0x240] sm:$0xff]
    %v152 = vld [vmem:[#allocation2 + $0x248] sm:$0xf]
    %v153 = vld [vmem:[#allocation2 + $0x24c] sm:$0xff]
    %v154 = vld [vmem:[#allocation2 + $0x254] sm:$0xf]
    %v155 = vld [vmem:[#allocation2 + $0x258] sm:$0xff]
    %v156 = vld [vmem:[#allocation2 + $0x260] sm:$0xf]
    %v157 = vld [vmem:[#allocation2 + $0x264] sm:$0xff]
    %v158 = vld [vmem:[#allocation2 + $0x26c] sm:$0xf]
    %v159 = vld [vmem:[#allocation2 + $0x270] sm:$0xff]
    %v160 = vld [vmem:[#allocation2 + $0x278] sm:$0xf]
    %v161 = vld [vmem:[#allocation2 + $0x27c] sm:$0xff]
    %v162 = vld [vmem:[#allocation2 + $0x284] sm:$0xf]
    %v163 = vld [vmem:[#allocation2 + $0x288] sm:$0xff]
    %v164 = vld [vmem:[#allocation2 + $0x290] sm:$0xf]
    %v165 = vld [vmem:[#allocation2 + $0x294] sm:$0xff]
    %v166 = vld [vmem:[#allocation2 + $0x29c] sm:$0xf]
    %v167 = vld [vmem:[#allocation2 + $0x2a0] sm:$0xff]
    %v168 = vld [vmem:[#allocation2 + $0x2a8] sm:$0xf]
    %v169 = vld [vmem:[#allocation2 + $0x2ac] sm:$0xff]
    %v170 = vld [vmem:[#allocation2 + $0x2b4] sm:$0xf]
    %v171 = vld [vmem:[#allocation2 + $0x2b8] sm:$0xff]
    %v172 = vld [vmem:[#allocation2 + $0x2c0] sm:$0xf]
    %v173 = vld [vmem:[#allocation2 + $0x2c4] sm:$0xff]
    %v174 = vld [vmem:[#allocation2 + $0x2cc] sm:$0xf]
    %v175 = vld [vmem:[#allocation2 + $0x2d0] sm:$0xff]
    %v176 = vld [vmem:[#allocation2 + $0x2d8] sm:$0xf]
    %v177 = vld [vmem:[#allocation2 + $0x2dc] sm:$0xff]
    %v178 = vld [vmem:[#allocation2 + $0x2e4] sm:$0xf]
    %v179 = vld [vmem:[#allocation2 + $0x2e8] sm:$0xff]
    %v180 = vld [vmem:[#allocation2 + $0x2f0] sm:$0xf]
    %v181 = vld [vmem:[#allocation2 + $0x2f4] sm:$0xff]
    %v182 = vld [vmem:[#allocation2 + $0x2fc] sm:$0xf]
    %v183 = vld [vmem:[#allocation2 + $0x300] sm:$0xff]
    %v184 = vld [vmem:[#allocation2 + $0x308] sm:$0xf]
    %v185 = vld [vmem:[#allocation2 + $0x30c] sm:$0xff]
    %v186 = vld [vmem:[#allocation2 + $0x314] sm:$0xf]
    %v187 = vld [vmem:[#allocation2 + $0x318] sm:$0xff]
    %v188 = vld [vmem:[#allocation2 + $0x320] sm:$0xf]
    %v189 = vld [vmem:[#allocation2 + $0x324] sm:$0xff]
    %v190 = vld [vmem:[#allocation2 + $0x32c] sm:$0xf]
    %v191 = vld [vmem:[#allocation2 + $0x330] sm:$0xff]
    %v192 = vld [vmem:[#allocation2 + $0x338] sm:$0xf]
    %v193 = vld [vmem:[#allocation2 + $0x33c] sm:$0xff]
    %v194 = vld [vmem:[#allocation2 + $0x344] sm:$0xf]
    %v195 = vld [vmem:[#allocation2 + $0x348] sm:$0xff]
    %v196 = vld [vmem:[#allocation2 + $0x350] sm:$0xf]
    %v197 = vld [vmem:[#allocation2 + $0x354] sm:$0xff]
    %v198 = vld [vmem:[#allocation2 + $0x35c] sm:$0xf]
    %v199 = vld [vmem:[#allocation2 + $0x360] sm:$0xff]
    %v200 = vld [vmem:[#allocation2 + $0x368] sm:$0xf]
    %v201 = vld [vmem:[#allocation2 + $0x36c] sm:$0xff]
    %v202 = vld [vmem:[#allocation2 + $0x374] sm:$0xf]
    %v203 = vld [vmem:[#allocation2 + $0x378] sm:$0xff]
    %v204 = vld [vmem:[#allocation2 + $0x380] sm:$0xf]
    %v205 = vld [vmem:[#allocation2 + $0x384] sm:$0xff]
    %v206 = vld [vmem:[#allocation2 + $0x38c] sm:$0xf]
    %v207 = vld [vmem:[#allocation2 + $0x390] sm:$0xff]
    %v208 = vld [vmem:[#allocation2 + $0x398] sm:$0xf]
    %v209 = vld [vmem:[#allocation2 + $0x39c] sm:$0xff]
    %v210 = vld [vmem:[#allocation2 + $0x3a4] sm:$0xf]
    %v211 = vld [vmem:[#allocation2 + $0x3a8] sm:$0xff]
    %v212 = vld [vmem:[#allocation2 + $0x3b0] sm:$0xf]
    %v213 = vld [vmem:[#allocation2 + $0x3b4] sm:$0xff]
    %v214 = vld [vmem:[#allocation2 + $0x3bc] sm:$0xf]
    %v215 = vld [vmem:[#allocation2 + $0x3c0] sm:$0xff]
    %v216 = vld [vmem:[#allocation2 + $0x3c8] sm:$0xf]
    %v217 = vld [vmem:[#allocation2 + $0x3cc] sm:$0xff]
    %v218 = vld [vmem:[#allocation2 + $0x3d4] sm:$0xf]
    %v219 = vld [vmem:[#allocation2 + $0x3d8] sm:$0xff]
    %v220 = vld [vmem:[#allocation2 + $0x3e0] sm:$0xf]
    %v221 = vld [vmem:[#allocation2 + $0x3e4] sm:$0xff]
    %v222 = vld [vmem:[#allocation2 + $0x3ec] sm:$0xf]
    %v223 = vld [vmem:[#allocation2 + $0x3f0] sm:$0xff]
    %v224 = vld [vmem:[#allocation2 + $0x3f8] sm:$0xf]
    %v225 = vld [vmem:[#allocation2 + $0x3fc] sm:$0xff]
    %v226 = vld [vmem:[#allocation2 + $0x404] sm:$0xf]
    %v227 = vld [vmem:[#allocation2 + $0x408] sm:$0xff]
    %v228 = vld [vmem:[#allocation2 + $0x410] sm:$0xf]
    %v229 = vld [vmem:[#allocation2 + $0x414] sm:$0xff]
    %v230 = vld [vmem:[#allocation2 + $0x41c] sm:$0xf]
    %v231 = vld [vmem:[#allocation2 + $0x420] sm:$0xff]
    %v232 = vld [vmem:[#allocation2 + $0x428] sm:$0xf]
    %v233 = vld [vmem:[#allocation2 + $0x42c] sm:$0xff]
    %v234 = vld [vmem:[#allocation2 + $0x434] sm:$0xf]
    %v235 = vld [vmem:[#allocation2 + $0x438] sm:$0xff]
    %v236 = vld [vmem:[#allocation2 + $0x440] sm:$0xf]
    %v237 = vld [vmem:[#allocation2 + $0x444] sm:$0xff]
    %v238 = vld [vmem:[#allocation2 + $0x44c] sm:$0xf]
    %v239 = vld [vmem:[#allocation2 + $0x450] sm:$0xff]
    %v240 = vld [vmem:[#allocation2 + $0x458] sm:$0xf]
    %v241 = vld [vmem:[#allocation2 + $0x45c] sm:$0xff]
    %v242 = vld [vmem:[#allocation2 + $0x464] sm:$0xf]
    %v243 = vld [vmem:[#allocation2 + $0x468] sm:$0xff]
    %v244 = vld [vmem:[#allocation2 + $0x470] sm:$0xf]
    %v245 = vld [vmem:[#allocation2 + $0x474] sm:$0xff]
    %v246 = vld [vmem:[#allocation2 + $0x47c] sm:$0xf]
    %v247 = vld [vmem:[#allocation2 + $0x480] sm:$0xff]
    %v248 = vld [vmem:[#allocation2 + $0x488] sm:$0xf]
    %v249 = vld [vmem:[#allocation2 + $0x48c] sm:$0xff]
    %v250 = vld [vmem:[#allocation2 + $0x494] sm:$0xf]
    %v251 = vld [vmem:[#allocation2 + $0x498] sm:$0xff]
    %v252 = vld [vmem:[#allocation2 + $0x4a0] sm:$0xf]
    %v253 = vld [vmem:[#allocation2 + $0x4a4] sm:$0xff]
    %v254 = vld [vmem:[#allocation2 + $0x4ac] sm:$0xf]
    %v255 = vld [vmem:[#allocation2 + $0x4b0] sm:$0xff]
    %v256 = vld [vmem:[#allocation2 + $0x4b8] sm:$0xf]
    %v257 = vld [vmem:[#allocation2 + $0x4bc] sm:$0xff]
    %v258 = vld [vmem:[#allocation2 + $0x4c4] sm:$0xf]
    %v259 = vld [vmem:[#allocation2 + $0x4c8] sm:$0xff]
    %v260 = vld [vmem:[#allocation2 + $0x4d0] sm:$0xf]
    %v261 = vld [vmem:[#allocation2 + $0x4d4] sm:$0xff]
    %v262 = vld [vmem:[#allocation2 + $0x4dc] sm:$0xf]
    %v263 = vld [vmem:[#allocation2 + $0x4e0] sm:$0xff]
    %v264 = vld [vmem:[#allocation2 + $0x4e8] sm:$0xf]
    %v265 = vld [vmem:[#allocation2 + $0x4ec] sm:$0xff]
    %v266 = vld [vmem:[#allocation2 + $0x4f4] sm:$0xf]
    %v267 = vld [vmem:[#allocation2 + $0x4f8] sm:$0xff]
    %v268 = vld [vmem:[#allocation2 + $0x500] sm:$0xf]
    %v269 = vld [vmem:[#allocation2 + $0x504] sm:$0xff]
    %v270 = vld [vmem:[#allocation2 + $0x50c] sm:$0xf]
    %v271 = vld [vmem:[#allocation2 + $0x510] sm:$0xff]
    %v272 = vld [vmem:[#allocation2 + $0x518] sm:$0xf]
    %v273 = vld [vmem:[#allocation2 + $0x51c] sm:$0xff]
    %v274 = vld [vmem:[#allocation2 + $0x524] sm:$0xf]
    %v275 = vld [vmem:[#allocation2 + $0x528] sm:$0xff]
    %v276 = vld [vmem:[#allocation2 + $0x530] sm:$0xf]
    %v277 = vld [vmem:[#allocation2 + $0x534] sm:$0xff]
    %v278 = vld [vmem:[#allocation2 + $0x53c] sm:$0xf]
    %v279 = vld [vmem:[#allocation2 + $0x540] sm:$0xff]
    %v280 = vld [vmem:[#allocation2 + $0x548] sm:$0xf]
    %v281 = vld [vmem:[#allocation2 + $0x54c] sm:$0xff]
    %v282 = vld [vmem:[#allocation2 + $0x554] sm:$0xf]
    %v283 = vld [vmem:[#allocation2 + $0x558] sm:$0xff]
    %v284 = vld [vmem:[#allocation2 + $0x560] sm:$0xf]
    %v285 = vld [vmem:[#allocation2 + $0x564] sm:$0xff]
    %v286 = vld [vmem:[#allocation2 + $0x56c] sm:$0xf]
    %v287 = vld [vmem:[#allocation2 + $0x570] sm:$0xff]
    %v288 = vld [vmem:[#allocation2 + $0x578] sm:$0xf]
    %v289 = vld [vmem:[#allocation2 + $0x57c] sm:$0xff]
    %v290 = vld [vmem:[#allocation2 + $0x584] sm:$0xf]
    %v291 = vld [vmem:[#allocation2 + $0x588] sm:$0xff]
    %v292 = vld [vmem:[#allocation2 + $0x590] sm:$0xf]
    %v293 = vld [vmem:[#allocation2 + $0x594] sm:$0xff]
    %v294 = vld [vmem:[#allocation2 + $0x59c] sm:$0xf]
    %v295 = vld [vmem:[#allocation2 + $0x5a0] sm:$0xff]
    %v296 = vld [vmem:[#allocation2 + $0x5a8] sm:$0xf]
    %v297 = vld [vmem:[#allocation2 + $0x5ac] sm:$0xff]
    %v298 = vld [vmem:[#allocation2 + $0x5b4] sm:$0xf]
    %v299 = vld [vmem:[#allocation2 + $0x5b8] sm:$0xff]
    %v300 = vld [vmem:[#allocation2 + $0x5c0] sm:$0xf]
    %v301 = vld [vmem:[#allocation2 + $0x5c4] sm:$0xff]
    %v302 = vld [vmem:[#allocation2 + $0x5cc] sm:$0xf]
    %v303 = vld [vmem:[#allocation2 + $0x5d0] sm:$0xff]
    %v304 = vld [vmem:[#allocation2 + $0x5d8] sm:$0xf]
    %v305 = vld [vmem:[#allocation2 + $0x5dc] sm:$0xff]
    %v306 = vld [vmem:[#allocation2 + $0x5e4] sm:$0xf]
    %v307 = vld [vmem:[#allocation2 + $0x5e8] sm:$0xff]
    %v308 = vld [vmem:[#allocation2 + $0x5f0] sm:$0xf]
    %v309 = vld [vmem:[#allocation2 + $0x5f4] sm:$0xff]
    %v310 = vld [vmem:[#allocation2 + $0x5fc] sm:$0xf]
    %v311 = vld [vmem:[%s2] sm:$0x7]
    %v313 = vlaneseq
    %v314 = vshrl.u32 %v313, 7
    %v315 = vsub.s32 0, %v314
    %v316 = vrot.slane %v311, %v315
    %v317 = vlaneseq
    %v318 = vshrl.u32 %v317, 7
    %v319 = vsub.s32 1, %v318
    %v320 = vrot.slane %v311, %v319
    %v321 = vlaneseq
    %v322 = vshrl.u32 %v321, 7
    %v323 = vsub.s32 2, %v322
    %v324 = vrot.slane %v311, %v323
    %v332 = vunpack.c.l.b16 %v51
    %v333 = vunpack.c.h.b16 %v51
    %v334 = vunpack.c.l.b16 %v52
    %v335 = vunpack.c.h.b16 %v52
    %v336 = vunpack.c.l.b16 %v53
    %v337 = vunpack.c.h.b16 %v53
    %v338 = vunpack.c.l.b16 %v54
    %v339 = vunpack.c.h.b16 %v54
    %v340 = vpack.c.b16 %v332, %v332
    %v341 = vpack.c.b16 %v333, %v333
    %v342 = vpack.c.b16 %v334, %v334
    %v343 = vpack.c.b16 %v335, %v335
    %v344 = vpack.c.b16 %v336, %v336
    %v345 = vpack.c.b16 %v337, %v337
    %v346 = vpack.c.b16 %v338, %v338
    %v347 = vpack.c.b16 %v339, %v339
    %v612 = vunpack.c.l.b16 %v55
    %v613 = vunpack.c.h.b16 %v55
    %v614 = vunpack.c.l.b16 %v56
    %v615 = vunpack.c.l.b16 %v57
    %v616 = vunpack.c.h.b16 %v57
    %v617 = vunpack.c.l.b16 %v58
    %v618 = vunpack.c.l.b16 %v59
    %v619 = vunpack.c.h.b16 %v59
    %v620 = vunpack.c.l.b16 %v60
    %v621 = vunpack.c.l.b16 %v61
    %v622 = vunpack.c.h.b16 %v61
    %v623 = vunpack.c.l.b16 %v62
    %v624 = vunpack.c.l.b16 %v63
    %v625 = vunpack.c.h.b16 %v63
    %v626 = vunpack.c.l.b16 %v64
    %v627 = vunpack.c.l.b16 %v65
    %v628 = vunpack.c.h.b16 %v65
    %v629 = vunpack.c.l.b16 %v66
    %v630 = vunpack.c.l.b16 %v67
    %v631 = vunpack.c.h.b16 %v67
    %v632 = vunpack.c.l.b16 %v68
    %v633 = vunpack.c.l.b16 %v69
    %v634 = vunpack.c.h.b16 %v69
    %v635 = vunpack.c.l.b16 %v70
    %v636 = vunpack.c.l.b16 %v71
    %v637 = vunpack.c.h.b16 %v71
    %v638 = vunpack.c.l.b16 %v72
    %v639 = vunpack.c.l.b16 %v73
    %v640 = vunpack.c.h.b16 %v73
    %v641 = vunpack.c.l.b16 %v74
    %v642 = vunpack.c.l.b16 %v75
    %v643 = vunpack.c.h.b16 %v75
    %v644 = vunpack.c.l.b16 %v76
    %v645 = vunpack.c.l.b16 %v77
    %v646 = vunpack.c.h.b16 %v77
    %v647 = vunpack.c.l.b16 %v78
    %v648 = vunpack.c.l.b16 %v79
    %v649 = vunpack.c.h.b16 %v79
    %v650 = vunpack.c.l.b16 %v80
    %v651 = vunpack.c.l.b16 %v81
    %v652 = vunpack.c.h.b16 %v81
    %v653 = vunpack.c.l.b16 %v82
    %v654 = vunpack.c.l.b16 %v83
    %v655 = vunpack.c.h.b16 %v83
    %v656 = vunpack.c.l.b16 %v84
    %v657 = vunpack.c.l.b16 %v85
    %v658 = vunpack.c.h.b16 %v85
    %v659 = vunpack.c.l.b16 %v86
    %v660 = vunpack.c.l.b16 %v87
    %v661 = vunpack.c.h.b16 %v87
    %v662 = vunpack.c.l.b16 %v88
    %v663 = vunpack.c.l.b16 %v89
    %v664 = vunpack.c.h.b16 %v89
    %v665 = vunpack.c.l.b16 %v90
    %v666 = vunpack.c.l.b16 %v91
    %v667 = vunpack.c.h.b16 %v91
    %v668 = vunpack.c.l.b16 %v92
    %v669 = vunpack.c.l.b16 %v93
    %v670 = vunpack.c.h.b16 %v93
    %v671 = vunpack.c.l.b16 %v94
    %v672 = vunpack.c.l.b16 %v95
    %v673 = vunpack.c.h.b16 %v95
    %v674 = vunpack.c.l.b16 %v96
    %v675 = vunpack.c.l.b16 %v97
    %v676 = vunpack.c.h.b16 %v97
    %v677 = vunpack.c.l.b16 %v98
    %v678 = vunpack.c.l.b16 %v99
    %v679 = vunpack.c.h.b16 %v99
    %v680 = vunpack.c.l.b16 %v100
    %v681 = vunpack.c.l.b16 %v101
    %v682 = vunpack.c.h.b16 %v101
    %v683 = vunpack.c.l.b16 %v102
    %v684 = vunpack.c.l.b16 %v103
    %v685 = vunpack.c.h.b16 %v103
    %v686 = vunpack.c.l.b16 %v104
    %v687 = vunpack.c.l.b16 %v105
    %v688 = vunpack.c.h.b16 %v105
    %v689 = vunpack.c.l.b16 %v106
    %v690 = vunpack.c.l.b16 %v107
    %v691 = vunpack.c.h.b16 %v107
    %v692 = vunpack.c.l.b16 %v108
    %v693 = vunpack.c.l.b16 %v109
    %v694 = vunpack.c.h.b16 %v109
    %v695 = vunpack.c.l.b16 %v110
    %v696 = vunpack.c.l.b16 %v111
    %v697 = vunpack.c.h.b16 %v111
    %v698 = vunpack.c.l.b16 %v112
    %v699 = vunpack.c.l.b16 %v113
    %v700 = vunpack.c.h.b16 %v113
    %v701 = vunpack.c.l.b16 %v114
    %v702 = vunpack.c.l.b16 %v115
    %v703 = vunpack.c.h.b16 %v115
    %v704 = vunpack.c.l.b16 %v116
    %v705 = vunpack.c.l.b16 %v117
    %v706 = vunpack.c.h.b16 %v117
    %v707 = vunpack.c.l.b16 %v118
    %v708 = vunpack.c.l.b16 %v119
    %v709 = vunpack.c.h.b16 %v119
    %v710 = vunpack.c.l.b16 %v120
    %v711 = vunpack.c.l.b16 %v121
    %v712 = vunpack.c.h.b16 %v121
    %v713 = vunpack.c.l.b16 %v122
    %v714 = vunpack.c.l.b16 %v123
    %v715 = vunpack.c.h.b16 %v123
    %v716 = vunpack.c.l.b16 %v124
    %v717 = vunpack.c.l.b16 %v125
    %v718 = vunpack.c.h.b16 %v125
    %v719 = vunpack.c.l.b16 %v126
    %v720 = vunpack.c.l.b16 %v127
    %v721 = vunpack.c.h.b16 %v127
    %v722 = vunpack.c.l.b16 %v128
    %v723 = vunpack.c.l.b16 %v129
    %v724 = vunpack.c.h.b16 %v129
    %v725 = vunpack.c.l.b16 %v130
    %v726 = vunpack.c.l.b16 %v131
    %v727 = vunpack.c.h.b16 %v131
    %v728 = vunpack.c.l.b16 %v132
    %v729 = vunpack.c.l.b16 %v133
    %v730 = vunpack.c.h.b16 %v133
    %v731 = vunpack.c.l.b16 %v134
    %v732 = vunpack.c.l.b16 %v135
    %v733 = vunpack.c.h.b16 %v135
    %v734 = vunpack.c.l.b16 %v136
    %v735 = vunpack.c.l.b16 %v137
    %v736 = vunpack.c.h.b16 %v137
    %v737 = vunpack.c.l.b16 %v138
    %v738 = vunpack.c.l.b16 %v139
    %v739 = vunpack.c.h.b16 %v139
    %v740 = vunpack.c.l.b16 %v140
    %v741 = vunpack.c.l.b16 %v141
    %v742 = vunpack.c.h.b16 %v141
    %v743 = vunpack.c.l.b16 %v142
    %v744 = vunpack.c.l.b16 %v143
    %v745 = vunpack.c.h.b16 %v143
    %v746 = vunpack.c.l.b16 %v144
    %v747 = vunpack.c.l.b16 %v145
    %v748 = vunpack.c.h.b16 %v145
    %v749 = vunpack.c.l.b16 %v146
    %v750 = vunpack.c.l.b16 %v147
    %v751 = vunpack.c.h.b16 %v147
    %v752 = vunpack.c.l.b16 %v148
    %v753 = vunpack.c.l.b16 %v149
    %v754 = vunpack.c.h.b16 %v149
    %v755 = vunpack.c.l.b16 %v150
    %v756 = vunpack.c.l.b16 %v151
    %v757 = vunpack.c.h.b16 %v151
    %v758 = vunpack.c.l.b16 %v152
    %v759 = vunpack.c.l.b16 %v153
    %v760 = vunpack.c.h.b16 %v153
    %v761 = vunpack.c.l.b16 %v154
    %v762 = vunpack.c.l.b16 %v155
    %v763 = vunpack.c.h.b16 %v155
    %v764 = vunpack.c.l.b16 %v156
    %v765 = vunpack.c.l.b16 %v157
    %v766 = vunpack.c.h.b16 %v157
    %v767 = vunpack.c.l.b16 %v158
    %v768 = vunpack.c.l.b16 %v159
    %v769 = vunpack.c.h.b16 %v159
    %v770 = vunpack.c.l.b16 %v160
    %v771 = vunpack.c.l.b16 %v161
    %v772 = vunpack.c.h.b16 %v161
    %v773 = vunpack.c.l.b16 %v162
    %v774 = vunpack.c.l.b16 %v163
    %v775 = vunpack.c.h.b16 %v163
    %v776 = vunpack.c.l.b16 %v164
    %v777 = vunpack.c.l.b16 %v165
    %v778 = vunpack.c.h.b16 %v165
    %v779 = vunpack.c.l.b16 %v166
    %v780 = vunpack.c.l.b16 %v167
    %v781 = vunpack.c.h.b16 %v167
    %v782 = vunpack.c.l.b16 %v168
    %v783 = vunpack.c.l.b16 %v169
    %v784 = vunpack.c.h.b16 %v169
    %v785 = vunpack.c.l.b16 %v170
    %v786 = vunpack.c.l.b16 %v171
    %v787 = vunpack.c.h.b16 %v171
    %v788 = vunpack.c.l.b16 %v172
    %v789 = vunpack.c.l.b16 %v173
    %v790 = vunpack.c.h.b16 %v173
    %v791 = vunpack.c.l.b16 %v174
    %v792 = vunpack.c.l.b16 %v175
    %v793 = vunpack.c.h.b16 %v175
    %v794 = vunpack.c.l.b16 %v176
    %v795 = vunpack.c.l.b16 %v177
    %v796 = vunpack.c.h.b16 %v177
    %v797 = vunpack.c.l.b16 %v178
    %v798 = vunpack.c.l.b16 %v179
    %v799 = vunpack.c.h.b16 %v179
    %v800 = vunpack.c.l.b16 %v180
    %v801 = vunpack.c.l.b16 %v181
    %v802 = vunpack.c.h.b16 %v181
    %v803 = vunpack.c.l.b16 %v182
    %v804 = vunpack.c.l.b16 %v183
    %v805 = vunpack.c.h.b16 %v183
    %v806 = vunpack.c.l.b16 %v184
    %v807 = vunpack.c.l.b16 %v185
    %v808 = vunpack.c.h.b16 %v185
    %v809 = vunpack.c.l.b16 %v186
    %v810 = vunpack.c.l.b16 %v187
    %v811 = vunpack.c.h.b16 %v187
    %v812 = vunpack.c.l.b16 %v188
    %v813 = vunpack.c.l.b16 %v189
    %v814 = vunpack.c.h.b16 %v189
    %v815 = vunpack.c.l.b16 %v190
    %v816 = vunpack.c.l.b16 %v191
    %v817 = vunpack.c.h.b16 %v191
    %v818 = vunpack.c.l.b16 %v192
    %v819 = vunpack.c.l.b16 %v193
    %v820 = vunpack.c.h.b16 %v193
    %v821 = vunpack.c.l.b16 %v194
    %v822 = vunpack.c.l.b16 %v195
    %v823 = vunpack.c.h.b16 %v195
    %v824 = vunpack.c.l.b16 %v196
    %v825 = vunpack.c.l.b16 %v197
    %v826 = vunpack.c.h.b16 %v197
    %v827 = vunpack.c.l.b16 %v198
    %v828 = vunpack.c.l.b16 %v199
    %v829 = vunpack.c.h.b16 %v199
    %v830 = vunpack.c.l.b16 %v200
    %v831 = vunpack.c.l.b16 %v201
    %v832 = vunpack.c.h.b16 %v201
    %v833 = vunpack.c.l.b16 %v202
    %v834 = vunpack.c.l.b16 %v203
    %v835 = vunpack.c.h.b16 %v203
    %v836 = vunpack.c.l.b16 %v204
    %v837 = vunpack.c.l.b16 %v205
    %v838 = vunpack.c.h.b16 %v205
    %v839 = vunpack.c.l.b16 %v206
    %v840 = vunpack.c.l.b16 %v207
    %v841 = vunpack.c.h.b16 %v207
    %v842 = vunpack.c.l.b16 %v208
    %v843 = vunpack.c.l.b16 %v209
    %v844 = vunpack.c.h.b16 %v209
    %v845 = vunpack.c.l.b16 %v210
    %v846 = vunpack.c.l.b16 %v211
    %v847 = vunpack.c.h.b16 %v211
    %v848 = vunpack.c.l.b16 %v212
    %v849 = vunpack.c.l.b16 %v213
    %v850 = vunpack.c.h.b16 %v213
    %v851 = vunpack.c.l.b16 %v214
    %v852 = vunpack.c.l.b16 %v215
    %v853 = vunpack.c.h.b16 %v215
    %v854 = vunpack.c.l.b16 %v216
    %v855 = vunpack.c.l.b16 %v217
    %v856 = vunpack.c.h.b16 %v217
    %v857 = vunpack.c.l.b16 %v218
    %v858 = vunpack.c.l.b16 %v219
    %v859 = vunpack.c.h.b16 %v219
    %v860 = vunpack.c.l.b16 %v220
    %v861 = vunpack.c.l.b16 %v221
    %v862 = vunpack.c.h.b16 %v221
    %v863 = vunpack.c.l.b16 %v222
    %v864 = vunpack.c.l.b16 %v223
    %v865 = vunpack.c.h.b16 %v223
    %v866 = vunpack.c.l.b16 %v224
    %v867 = vunpack.c.l.b16 %v225
    %v868 = vunpack.c.h.b16 %v225
    %v869 = vunpack.c.l.b16 %v226
    %v870 = vunpack.c.l.b16 %v227
    %v871 = vunpack.c.h.b16 %v227
    %v872 = vunpack.c.l.b16 %v228
    %v873 = vunpack.c.l.b16 %v229
    %v874 = vunpack.c.h.b16 %v229
    %v875 = vunpack.c.l.b16 %v230
    %v876 = vunpack.c.l.b16 %v231
    %v877 = vunpack.c.h.b16 %v231
    %v878 = vunpack.c.l.b16 %v232
    %v879 = vunpack.c.l.b16 %v233
    %v880 = vunpack.c.h.b16 %v233
    %v881 = vunpack.c.l.b16 %v234
    %v882 = vunpack.c.l.b16 %v235
    %v883 = vunpack.c.h.b16 %v235
    %v884 = vunpack.c.l.b16 %v236
    %v885 = vunpack.c.l.b16 %v237
    %v886 = vunpack.c.h.b16 %v237
    %v887 = vunpack.c.l.b16 %v238
    %v888 = vunpack.c.l.b16 %v239
    %v889 = vunpack.c.h.b16 %v239
    %v890 = vunpack.c.l.b16 %v240
    %v891 = vunpack.c.l.b16 %v241
    %v892 = vunpack.c.h.b16 %v241
    %v893 = vunpack.c.l.b16 %v242
    %v894 = vunpack.c.l.b16 %v243
    %v895 = vunpack.c.h.b16 %v243
    %v896 = vunpack.c.l.b16 %v244
    %v897 = vunpack.c.l.b16 %v245
    %v898 = vunpack.c.h.b16 %v245
    %v899 = vunpack.c.l.b16 %v246
    %v900 = vunpack.c.l.b16 %v247
    %v901 = vunpack.c.h.b16 %v247
    %v902 = vunpack.c.l.b16 %v248
    %v903 = vunpack.c.l.b16 %v249
    %v904 = vunpack.c.h.b16 %v249
    %v905 = vunpack.c.l.b16 %v250
    %v906 = vunpack.c.l.b16 %v251
    %v907 = vunpack.c.h.b16 %v251
    %v908 = vunpack.c.l.b16 %v252
    %v909 = vunpack.c.l.b16 %v253
    %v910 = vunpack.c.h.b16 %v253
    %v911 = vunpack.c.l.b16 %v254
    %v912 = vunpack.c.l.b16 %v255
    %v913 = vunpack.c.h.b16 %v255
    %v914 = vunpack.c.l.b16 %v256
    %v915 = vunpack.c.l.b16 %v257
    %v916 = vunpack.c.h.b16 %v257
    %v917 = vunpack.c.l.b16 %v258
    %v918 = vunpack.c.l.b16 %v259
    %v919 = vunpack.c.h.b16 %v259
    %v920 = vunpack.c.l.b16 %v260
    %v921 = vunpack.c.l.b16 %v261
    %v922 = vunpack.c.h.b16 %v261
    %v923 = vunpack.c.l.b16 %v262
    %v924 = vunpack.c.l.b16 %v263
    %v925 = vunpack.c.h.b16 %v263
    %v926 = vunpack.c.l.b16 %v264
    %v927 = vunpack.c.l.b16 %v265
    %v928 = vunpack.c.h.b16 %v265
    %v929 = vunpack.c.l.b16 %v266
    %v930 = vunpack.c.l.b16 %v267
    %v931 = vunpack.c.h.b16 %v267
    %v932 = vunpack.c.l.b16 %v268
    %v933 = vunpack.c.l.b16 %v269
    %v934 = vunpack.c.h.b16 %v269
    %v935 = vunpack.c.l.b16 %v270
    %v936 = vunpack.c.l.b16 %v271
    %v937 = vunpack.c.h.b16 %v271
    %v938 = vunpack.c.l.b16 %v272
    %v939 = vunpack.c.l.b16 %v273
    %v940 = vunpack.c.h.b16 %v273
    %v941 = vunpack.c.l.b16 %v274
    %v942 = vunpack.c.l.b16 %v275
    %v943 = vunpack.c.h.b16 %v275
    %v944 = vunpack.c.l.b16 %v276
    %v945 = vunpack.c.l.b16 %v277
    %v946 = vunpack.c.h.b16 %v277
    %v947 = vunpack.c.l.b16 %v278
    %v948 = vunpack.c.l.b16 %v279
    %v949 = vunpack.c.h.b16 %v279
    %v950 = vunpack.c.l.b16 %v280
    %v951 = vunpack.c.l.b16 %v281
    %v952 = vunpack.c.h.b16 %v281
    %v953 = vunpack.c.l.b16 %v282
    %v954 = vunpack.c.l.b16 %v283
    %v955 = vunpack.c.h.b16 %v283
    %v956 = vunpack.c.l.b16 %v284
    %v957 = vunpack.c.l.b16 %v285
    %v958 = vunpack.c.h.b16 %v285
    %v959 = vunpack.c.l.b16 %v286
    %v960 = vunpack.c.l.b16 %v287
    %v961 = vunpack.c.h.b16 %v287
    %v962 = vunpack.c.l.b16 %v288
    %v963 = vunpack.c.l.b16 %v289
    %v964 = vunpack.c.h.b16 %v289
    %v965 = vunpack.c.l.b16 %v290
    %v966 = vunpack.c.l.b16 %v291
    %v967 = vunpack.c.h.b16 %v291
    %v968 = vunpack.c.l.b16 %v292
    %v969 = vunpack.c.l.b16 %v293
    %v970 = vunpack.c.h.b16 %v293
    %v971 = vunpack.c.l.b16 %v294
    %v972 = vunpack.c.l.b16 %v295
    %v973 = vunpack.c.h.b16 %v295
    %v974 = vunpack.c.l.b16 %v296
    %v975 = vunpack.c.l.b16 %v297
    %v976 = vunpack.c.h.b16 %v297
    %v977 = vunpack.c.l.b16 %v298
    %v978 = vunpack.c.l.b16 %v299
    %v979 = vunpack.c.h.b16 %v299
    %v980 = vunpack.c.l.b16 %v300
    %v981 = vunpack.c.l.b16 %v301
    %v982 = vunpack.c.h.b16 %v301
    %v983 = vunpack.c.l.b16 %v302
    %v984 = vunpack.c.l.b16 %v303
    %v985 = vunpack.c.h.b16 %v303
    %v986 = vunpack.c.l.b16 %v304
    %v987 = vunpack.c.l.b16 %v305
    %v988 = vunpack.c.h.b16 %v305
    %v989 = vunpack.c.l.b16 %v306
    %v990 = vunpack.c.l.b16 %v307
    %v991 = vunpack.c.h.b16 %v307
    %v992 = vunpack.c.l.b16 %v308
    %v993 = vunpack.c.l.b16 %v309
    %v994 = vunpack.c.h.b16 %v309
    %v995 = vunpack.c.l.b16 %v310
    %v996 = vpack.c.b16 %v615, %v612
    %v997 = vpack.c.b16 %v616, %v613
    %v998 = vpack.c.b16 %v617, %v614
    %v999 = vpack.c.b16 %v621, %v618
    %v1000 = vpack.c.b16 %v622, %v619
    %v1001 = vpack.c.b16 %v623, %v620
    %v1002 = vpack.c.b16 %v627, %v624
    %v1003 = vpack.c.b16 %v628, %v625
    %v1004 = vpack.c.b16 %v629, %v626
    %v1005 = vpack.c.b16 %v633, %v630
    %v1006 = vpack.c.b16 %v634, %v631
    %v1007 = vpack.c.b16 %v635, %v632
    %v1008 = vpack.c.b16 %v639, %v636
    %v1009 = vpack.c.b16 %v640, %v637
    %v1010 = vpack.c.b16 %v641, %v638
    %v1011 = vpack.c.b16 %v645, %v642
    %v1012 = vpack.c.b16 %v646, %v643
    %v1013 = vpack.c.b16 %v647, %v644
    %v1014 = vpack.c.b16 %v651, %v648
    %v1015 = vpack.c.b16 %v652, %v649
    %v1016 = vpack.c.b16 %v653, %v650
    %v1017 = vpack.c.b16 %v657, %v654
    %v1018 = vpack.c.b16 %v658, %v655
    %v1019 = vpack.c.b16 %v659, %v656
    %v1020 = vpack.c.b16 %v663, %v660
    %v1021 = vpack.c.b16 %v664, %v661
    %v1022 = vpack.c.b16 %v665, %v662
    %v1023 = vpack.c.b16 %v669, %v666
    %v1024 = vpack.c.b16 %v670, %v667
    %v1025 = vpack.c.b16 %v671, %v668
    %v1026 = vpack.c.b16 %v675, %v672
    %v1027 = vpack.c.b16 %v676, %v673
    %v1028 = vpack.c.b16 %v677, %v674
    %v1029 = vpack.c.b16 %v681, %v678
    %v1030 = vpack.c.b16 %v682, %v679
    %v1031 = vpack.c.b16 %v683, %v680
    %v1032 = vpack.c.b16 %v687, %v684
    %v1033 = vpack.c.b16 %v688, %v685
    %v1034 = vpack.c.b16 %v689, %v686
    %v1035 = vpack.c.b16 %v693, %v690
    %v1036 = vpack.c.b16 %v694, %v691
    %v1037 = vpack.c.b16 %v695, %v692
    %v1038 = vpack.c.b16 %v699, %v696
    %v1039 = vpack.c.b16 %v700, %v697
    %v1040 = vpack.c.b16 %v701, %v698
    %v1041 = vpack.c.b16 %v705, %v702
    %v1042 = vpack.c.b16 %v706, %v703
    %v1043 = vpack.c.b16 %v707, %v704
    %v1044 = vpack.c.b16 %v711, %v708
    %v1045 = vpack.c.b16 %v712, %v709
    %v1046 = vpack.c.b16 %v713, %v710
    %v1047 = vpack.c.b16 %v717, %v714
    %v1048 = vpack.c.b16 %v718, %v715
    %v1049 = vpack.c.b16 %v719, %v716
    %v1050 = vpack.c.b16 %v723, %v720
    %v1051 = vpack.c.b16 %v724, %v721
    %v1052 = vpack.c.b16 %v725, %v722
    %v1053 = vpack.c.b16 %v729, %v726
    %v1054 = vpack.c.b16 %v730, %v727
    %v1055 = vpack.c.b16 %v731, %v728
    %v1056 = vpack.c.b16 %v735, %v732
    %v1057 = vpack.c.b16 %v736, %v733
    %v1058 = vpack.c.b16 %v737, %v734
    %v1059 = vpack.c.b16 %v741, %v738
    %v1060 = vpack.c.b16 %v742, %v739
    %v1061 = vpack.c.b16 %v743, %v740
    %v1062 = vpack.c.b16 %v747, %v744
    %v1063 = vpack.c.b16 %v748, %v745
    %v1064 = vpack.c.b16 %v749, %v746
    %v1065 = vpack.c.b16 %v753, %v750
    %v1066 = vpack.c.b16 %v754, %v751
    %v1067 = vpack.c.b16 %v755, %v752
    %v1068 = vpack.c.b16 %v759, %v756
    %v1069 = vpack.c.b16 %v760, %v757
    %v1070 = vpack.c.b16 %v761, %v758
    %v1071 = vpack.c.b16 %v765, %v762
    %v1072 = vpack.c.b16 %v766, %v763
    %v1073 = vpack.c.b16 %v767, %v764
    %v1074 = vpack.c.b16 %v771, %v768
    %v1075 = vpack.c.b16 %v772, %v769
    %v1076 = vpack.c.b16 %v773, %v770
    %v1077 = vpack.c.b16 %v777, %v774
    %v1078 = vpack.c.b16 %v778, %v775
    %v1079 = vpack.c.b16 %v779, %v776
    %v1080 = vpack.c.b16 %v783, %v780
    %v1081 = vpack.c.b16 %v784, %v781
    %v1082 = vpack.c.b16 %v785, %v782
    %v1083 = vpack.c.b16 %v789, %v786
    %v1084 = vpack.c.b16 %v790, %v787
    %v1085 = vpack.c.b16 %v791, %v788
    %v1086 = vpack.c.b16 %v795, %v792
    %v1087 = vpack.c.b16 %v796, %v793
    %v1088 = vpack.c.b16 %v797, %v794
    %v1089 = vpack.c.b16 %v801, %v798
    %v1090 = vpack.c.b16 %v802, %v799
    %v1091 = vpack.c.b16 %v803, %v800
    %v1092 = vpack.c.b16 %v807, %v804
    %v1093 = vpack.c.b16 %v808, %v805
    %v1094 = vpack.c.b16 %v809, %v806
    %v1095 = vpack.c.b16 %v813, %v810
    %v1096 = vpack.c.b16 %v814, %v811
    %v1097 = vpack.c.b16 %v815, %v812
    %v1098 = vpack.c.b16 %v819, %v816
    %v1099 = vpack.c.b16 %v820, %v817
    %v1100 = vpack.c.b16 %v821, %v818
    %v1101 = vpack.c.b16 %v825, %v822
    %v1102 = vpack.c.b16 %v826, %v823
    %v1103 = vpack.c.b16 %v827, %v824
    %v1104 = vpack.c.b16 %v831, %v828
    %v1105 = vpack.c.b16 %v832, %v829
    %v1106 = vpack.c.b16 %v833, %v830
    %v1107 = vpack.c.b16 %v837, %v834
    %v1108 = vpack.c.b16 %v838, %v835
    %v1109 = vpack.c.b16 %v839, %v836
    %v1110 = vpack.c.b16 %v843, %v840
    %v1111 = vpack.c.b16 %v844, %v841
    %v1112 = vpack.c.b16 %v845, %v842
    %v1113 = vpack.c.b16 %v849, %v846
    %v1114 = vpack.c.b16 %v850, %v847
    %v1115 = vpack.c.b16 %v851, %v848
    %v1116 = vpack.c.b16 %v855, %v852
    %v1117 = vpack.c.b16 %v856, %v853
    %v1118 = vpack.c.b16 %v857, %v854
    %v1119 = vpack.c.b16 %v861, %v858
    %v1120 = vpack.c.b16 %v862, %v859
    %v1121 = vpack.c.b16 %v863, %v860
    %v1122 = vpack.c.b16 %v867, %v864
    %v1123 = vpack.c.b16 %v868, %v865
    %v1124 = vpack.c.b16 %v869, %v866
    %v1125 = vpack.c.b16 %v873, %v870
    %v1126 = vpack.c.b16 %v874, %v871
    %v1127 = vpack.c.b16 %v875, %v872
    %v1128 = vpack.c.b16 %v879, %v876
    %v1129 = vpack.c.b16 %v880, %v877
    %v1130 = vpack.c.b16 %v881, %v878
    %v1131 = vpack.c.b16 %v885, %v882
    %v1132 = vpack.c.b16 %v886, %v883
    %v1133 = vpack.c.b16 %v887, %v884
    %v1134 = vpack.c.b16 %v891, %v888
    %v1135 = vpack.c.b16 %v892, %v889
    %v1136 = vpack.c.b16 %v893, %v890
    %v1137 = vpack.c.b16 %v897, %v894
    %v1138 = vpack.c.b16 %v898, %v895
    %v1139 = vpack.c.b16 %v899, %v896
    %v1140 = vpack.c.b16 %v903, %v900
    %v1141 = vpack.c.b16 %v904, %v901
    %v1142 = vpack.c.b16 %v905, %v902
    %v1143 = vpack.c.b16 %v909, %v906
    %v1144 = vpack.c.b16 %v910, %v907
    %v1145 = vpack.c.b16 %v911, %v908
    %v1146 = vpack.c.b16 %v915, %v912
    %v1147 = vpack.c.b16 %v916, %v913
    %v1148 = vpack.c.b16 %v917, %v914
    %v1149 = vpack.c.b16 %v921, %v918
    %v1150 = vpack.c.b16 %v922, %v919
    %v1151 = vpack.c.b16 %v923, %v920
    %v1152 = vpack.c.b16 %v927, %v924
    %v1153 = vpack.c.b16 %v928, %v925
    %v1154 = vpack.c.b16 %v929, %v926
    %v1155 = vpack.c.b16 %v933, %v930
    %v1156 = vpack.c.b16 %v934, %v931
    %v1157 = vpack.c.b16 %v935, %v932
    %v1158 = vpack.c.b16 %v939, %v936
    %v1159 = vpack.c.b16 %v940, %v937
    %v1160 = vpack.c.b16 %v941, %v938
    %v1161 = vpack.c.b16 %v945, %v942
    %v1162 = vpack.c.b16 %v946, %v943
    %v1163 = vpack.c.b16 %v947, %v944
    %v1164 = vpack.c.b16 %v951, %v948
    %v1165 = vpack.c.b16 %v952, %v949
    %v1166 = vpack.c.b16 %v953, %v950
    %v1167 = vpack.c.b16 %v957, %v954
    %v1168 = vpack.c.b16 %v958, %v955
    %v1169 = vpack.c.b16 %v959, %v956
    %v1170 = vpack.c.b16 %v963, %v960
    %v1171 = vpack.c.b16 %v964, %v961
    %v1172 = vpack.c.b16 %v965, %v962
    %v1173 = vpack.c.b16 %v969, %v966
    %v1174 = vpack.c.b16 %v970, %v967
    %v1175 = vpack.c.b16 %v971, %v968
    %v1176 = vpack.c.b16 %v975, %v972
    %v1177 = vpack.c.b16 %v976, %v973
    %v1178 = vpack.c.b16 %v977, %v974
    %v1179 = vpack.c.b16 %v981, %v978
    %v1180 = vpack.c.b16 %v982, %v979
    %v1181 = vpack.c.b16 %v983, %v980
    %v1182 = vpack.c.b16 %v987, %v984
    %v1183 = vpack.c.b16 %v988, %v985
    %v1184 = vpack.c.b16 %v989, %v986
    %v1185 = vpack.c.b16 %v993, %v990
    %v1186 = vpack.c.b16 %v994, %v991
    %v1187 = vpack.c.b16 %v995, %v992
    %1380 = vmatprep.subr.bf16.mxu0 %v1018
    %1381 = vmatpush1.bf16.msra.mxu0 %v1017
    %1382 = vmatprep.subr.bf16.mxu0 %v1015
    %1383 = vmatpush1.bf16.msra.mxu0 %v1014
    %1384 = vmatprep.subr.bf16.mxu0 %v1012
    %1385 = vmatpush1.bf16.msra.mxu0 %v1011
    %1386 = vmatprep.subr.bf16.mxu0 %v1009
    %1387 = vmatpush1.bf16.msra.mxu0 %v1008
    %1388 = vmatprep.subr.bf16.mxu0 %v1006
    %1389 = vmatpush1.bf16.msra.mxu0 %v1005
    %1390 = vmatprep.subr.bf16.mxu0 %v1003
    %1391 = vmatpush1.bf16.msra.mxu0 %v1002
    %1392 = vmatprep.subr.bf16.mxu0 %v1000
    %1393 = vmatpush1.bf16.msra.mxu0 %v999
    %1394 = vmatprep.subr.bf16.mxu0 %v997
    %1395 = vmatpush1.bf16.msra.mxu0 %v996
    %1396 = vmatprep.subr.bf16.mxu0 %v1042
    %1397 = vmatpush2.bf16.msra.mxu0 %v1041
    %1398 = vmatprep.subr.bf16.mxu0 %v1039
    %1399 = vmatpush2.bf16.msra.mxu0 %v1038
    %1400 = vmatprep.subr.bf16.mxu0 %v1036
    %1401 = vmatpush2.bf16.msra.mxu0 %v1035
    %1402 = vmatprep.subr.bf16.mxu0 %v1033
    %1403 = vmatpush2.bf16.msra.mxu0 %v1032
    %1404 = vmatprep.subr.bf16.mxu0 %v1030
    %1405 = vmatpush2.bf16.msra.mxu0 %v1029
    %1406 = vmatprep.subr.bf16.mxu0 %v1027
    %1407 = vmatpush2.bf16.msra.mxu0 %v1026
    %1408 = vmatprep.subr.bf16.mxu0 %v1024
    %1409 = vmatpush2.bf16.msra.mxu0 %v1023
    %1410 = vmatprep.subr.bf16.mxu0 %v1021
    %1411 = vmatpush2.bf16.msra.mxu0 %v1020
    %1412 = vmatprep.mubr.bf16.mxu0 %v341
    %1413 = vmatmul.mubr.bf16.gmra.mxu0 %v340
    %v1414 = vpop.f32.mrf.mxu0
    %v1415 = vadd.f32 %v316, %v1414
    %v1416 = vpop.f32.mrf.mxu0
    %v1417 = vadd.f32 %v320, %v1416
    %v1418 = vpop.f32.mrf.mxu0
    %v1419 = vpop.f32.mrf.mxu0
    %1420 = vdwg.mxu0
    %1421 = vmatprep.subr.bf16.mxu0 %v1066
    %1422 = vmatpush1.bf16.msra.mxu0 %v1065
    %1423 = vmatprep.subr.bf16.mxu0 %v1063
    %1424 = vmatpush1.bf16.msra.mxu0 %v1062
    %1425 = vmatprep.subr.bf16.mxu0 %v1060
    %1426 = vmatpush1.bf16.msra.mxu0 %v1059
    %1427 = vmatprep.subr.bf16.mxu0 %v1057
    %1428 = vmatpush1.bf16.msra.mxu0 %v1056
    %1429 = vmatprep.subr.bf16.mxu0 %v1054
    %1430 = vmatpush1.bf16.msra.mxu0 %v1053
    %1431 = vmatprep.subr.bf16.mxu0 %v1051
    %1432 = vmatpush1.bf16.msra.mxu0 %v1050
    %1433 = vmatprep.subr.bf16.mxu0 %v1048
    %1434 = vmatpush1.bf16.msra.mxu0 %v1047
    %1435 = vmatprep.subr.bf16.mxu0 %v1045
    %1436 = vmatpush1.bf16.msra.mxu0 %v1044
    %1437 = vmatprep.subr.bf16.mxu0 %v1090
    %1438 = vmatpush2.bf16.msra.mxu0 %v1089
    %1439 = vmatprep.subr.bf16.mxu0 %v1087
    %1440 = vmatpush2.bf16.msra.mxu0 %v1086
    %1441 = vmatprep.subr.bf16.mxu0 %v1084
    %1442 = vmatpush2.bf16.msra.mxu0 %v1083
    %1443 = vmatprep.subr.bf16.mxu0 %v1081
    %1444 = vmatpush2.bf16.msra.mxu0 %v1080
    %1445 = vmatprep.subr.bf16.mxu0 %v1078
    %1446 = vmatpush2.bf16.msra.mxu0 %v1077
    %1447 = vmatprep.subr.bf16.mxu0 %v1075
    %1448 = vmatpush2.bf16.msra.mxu0 %v1074
    %1449 = vmatprep.subr.bf16.mxu0 %v1072
    %1450 = vmatpush2.bf16.msra.mxu0 %v1071
    %1451 = vmatprep.subr.bf16.mxu0 %v1069
    %1452 = vmatpush2.bf16.msra.mxu0 %v1068
    %1453 = vmatprep.mubr.bf16.mxu0 %v343
    %1454 = vmatmul.mubr.bf16.gmra.mxu0 %v342
    %v1455 = vpop.f32.mrf.mxu0
    %v1456 = vadd.f32 %v1415, %v1455
    %v1457 = vpop.f32.mrf.mxu0
    %v1458 = vadd.f32 %v1417, %v1457
    %v1459 = vpop.f32.mrf.mxu0
    %v1460 = vpop.f32.mrf.mxu0
    %1461 = vdwg.mxu0
    %1462 = vmatprep.subr.bf16.mxu0 %v1114
    %1463 = vmatpush1.bf16.msra.mxu0 %v1113
    %1464 = vmatprep.subr.bf16.mxu0 %v1111
    %1465 = vmatpush1.bf16.msra.mxu0 %v1110
    %1466 = vmatprep.subr.bf16.mxu0 %v1108
    %1467 = vmatpush1.bf16.msra.mxu0 %v1107
    %1468 = vmatprep.subr.bf16.mxu0 %v1105
    %1469 = vmatpush1.bf16.msra.mxu0 %v1104
    %1470 = vmatprep.subr.bf16.mxu0 %v1102
    %1471 = vmatpush1.bf16.msra.mxu0 %v1101
    %1472 = vmatprep.subr.bf16.mxu0 %v1099
    %1473 = vmatpush1.bf16.msra.mxu0 %v1098
    %1474 = vmatprep.subr.bf16.mxu0 %v1096
    %1475 = vmatpush1.bf16.msra.mxu0 %v1095
    %1476 = vmatprep.subr.bf16.mxu0 %v1093
    %1477 = vmatpush1.bf16.msra.mxu0 %v1092
    %1478 = vmatprep.subr.bf16.mxu0 %v1138
    %1479 = vmatpush2.bf16.msra.mxu0 %v1137
    %1480 = vmatprep.subr.bf16.mxu0 %v1135
    %1481 = vmatpush2.bf16.msra.mxu0 %v1134
    %1482 = vmatprep.subr.bf16.mxu0 %v1132
    %1483 = vmatpush2.bf16.msra.mxu0 %v1131
    %1484 = vmatprep.subr.bf16.mxu0 %v1129
    %1485 = vmatpush2.bf16.msra.mxu0 %v1128
    %1486 = vmatprep.subr.bf16.mxu0 %v1126
    %1487 = vmatpush2.bf16.msra.mxu0 %v1125
    %1488 = vmatprep.subr.bf16.mxu0 %v1123
    %1489 = vmatpush2.bf16.msra.mxu0 %v1122
    %1490 = vmatprep.subr.bf16.mxu0 %v1120
    %1491 = vmatpush2.bf16.msra.mxu0 %v1119
    %1492 = vmatprep.subr.bf16.mxu0 %v1117
    %1493 = vmatpush2.bf16.msra.mxu0 %v1116
    %1494 = vmatprep.mubr.bf16.mxu0 %v345
    %1495 = vmatmul.mubr.bf16.gmra.mxu0 %v344
    %v1496 = vpop.f32.mrf.mxu0
    %v1497 = vadd.f32 %v1456, %v1496
    %v1498 = vpop.f32.mrf.mxu0
    %v1499 = vadd.f32 %v1458, %v1498
    %v1500 = vpop.f32.mrf.mxu0
    %v1501 = vpop.f32.mrf.mxu0
    %1502 = vdwg.mxu0
    %1503 = vmatprep.subr.bf16.mxu0 %v1162
    %1504 = vmatpush1.bf16.msra.mxu0 %v1161
    %1505 = vmatprep.subr.bf16.mxu0 %v1159
    %1506 = vmatpush1.bf16.msra.mxu0 %v1158
    %1507 = vmatprep.subr.bf16.mxu0 %v1156
    %1508 = vmatpush1.bf16.msra.mxu0 %v1155
    %1509 = vmatprep.subr.bf16.mxu0 %v1153
    %1510 = vmatpush1.bf16.msra.mxu0 %v1152
    %1511 = vmatprep.subr.bf16.mxu0 %v1150
    %1512 = vmatpush1.bf16.msra.mxu0 %v1149
    %1513 = vmatprep.subr.bf16.mxu0 %v1147
    %1514 = vmatpush1.bf16.msra.mxu0 %v1146
    %1515 = vmatprep.subr.bf16.mxu0 %v1144
    %1516 = vmatpush1.bf16.msra.mxu0 %v1143
    %1517 = vmatprep.subr.bf16.mxu0 %v1141
    %1518 = vmatpush1.bf16.msra.mxu0 %v1140
    %1519 = vmatprep.subr.bf16.mxu0 %v1186
    %1520 = vmatpush2.bf16.msra.mxu0 %v1185
    %1521 = vmatprep.subr.bf16.mxu0 %v1183
    %1522 = vmatpush2.bf16.msra.mxu0 %v1182
    %1523 = vmatprep.subr.bf16.mxu0 %v1180
    %1524 = vmatpush2.bf16.msra.mxu0 %v1179
    %1525 = vmatprep.subr.bf16.mxu0 %v1177
    %1526 = vmatpush2.bf16.msra.mxu0 %v1176
    %1527 = vmatprep.subr.bf16.mxu0 %v1174
    %1528 = vmatpush2.bf16.msra.mxu0 %v1173
    %1529 = vmatprep.subr.bf16.mxu0 %v1171
    %1530 = vmatpush2.bf16.msra.mxu0 %v1170
    %1531 = vmatprep.subr.bf16.mxu0 %v1168
    %1532 = vmatpush2.bf16.msra.mxu0 %v1167
    %1533 = vmatprep.subr.bf16.mxu0 %v1165
    %1534 = vmatpush2.bf16.msra.mxu0 %v1164
    %1535 = vmatprep.mubr.bf16.mxu0 %v347
    %1536 = vmatmul.mubr.bf16.gmra.mxu0 %v346
    %v1537 = vpop.f32.mrf.mxu0
    %v1538 = vadd.f32 %v1497, %v1537
    %v1539 = vpop.f32.mrf.mxu0
    %v1540 = vadd.f32 %v1499, %v1539
    %v1541 = vpop.f32.mrf.mxu0
    %v1542 = vpop.f32.mrf.mxu0
    %1543 = vdwg.mxu0
    %1544 = vmatprep.subr.bf16.mxu0 0
    %1545 = vmatpush1.bf16.msra.mxu0 %v1019
    %1546 = vmatprep.subr.bf16.mxu0 0
    %1547 = vmatpush1.bf16.msra.mxu0 %v1016
    %1548 = vmatprep.subr.bf16.mxu0 0
    %1549 = vmatpush1.bf16.msra.mxu0 %v1013
    %1550 = vmatprep.subr.bf16.mxu0 0
    %1551 = vmatpush1.bf16.msra.mxu0 %v1010
    %1552 = vmatprep.subr.bf16.mxu0 0
    %1553 = vmatpush1.bf16.msra.mxu0 %v1007
    %1554 = vmatprep.subr.bf16.mxu0 0
    %1555 = vmatpush1.bf16.msra.mxu0 %v1004
    %1556 = vmatprep.subr.bf16.mxu0 0
    %1557 = vmatpush1.bf16.msra.mxu0 %v1001
    %1558 = vmatprep.subr.bf16.mxu0 0
    %1559 = vmatpush1.bf16.msra.mxu0 %v998
    %1560 = vmatprep.subr.bf16.mxu0 0
    %1561 = vmatpush2.bf16.msra.mxu0 %v1043
    %1562 = vmatprep.subr.bf16.mxu0 0
    %1563 = vmatpush2.bf16.msra.mxu0 %v1040
    %1564 = vmatprep.subr.bf16.mxu0 0
    %1565 = vmatpush2.bf16.msra.mxu0 %v1037
    %1566 = vmatprep.subr.bf16.mxu0 0
    %1567 = vmatpush2.bf16.msra.mxu0 %v1034
    %1568 = vmatprep.subr.bf16.mxu0 0
    %1569 = vmatpush2.bf16.msra.mxu0 %v1031
    %1570 = vmatprep.subr.bf16.mxu0 0
    %1571 = vmatpush2.bf16.msra.mxu0 %v1028
    %1572 = vmatprep.subr.bf16.mxu0 0
    %1573 = vmatpush2.bf16.msra.mxu0 %v1025
    %1574 = vmatprep.subr.bf16.mxu0 0
    %1575 = vmatpush2.bf16.msra.mxu0 %v1022
    %1576 = vmatprep.mubr.bf16.mxu0 %v341
    %1577 = vmatmul.mubr.bf16.gmra.mxu0 %v340
    %v1578 = vpop.f32.mrf.mxu0
    %v1579 = vadd.f32 %v324, %v1578
    %v1580 = vpop.f32.mrf.mxu0
    %v1581 = vpop.f32.mrf.mxu0
    %v1582 = vpop.f32.mrf.mxu0
    %1583 = vdwg.mxu0
    %1584 = vmatprep.subr.bf16.mxu0 0
    %1585 = vmatpush1.bf16.msra.mxu0 %v1067
    %1586 = vmatprep.subr.bf16.mxu0 0
    %1587 = vmatpush1.bf16.msra.mxu0 %v1064
    %1588 = vmatprep.subr.bf16.mxu0 0
    %1589 = vmatpush1.bf16.msra.mxu0 %v1061
    %1590 = vmatprep.subr.bf16.mxu0 0
    %1591 = vmatpush1.bf16.msra.mxu0 %v1058
    %1592 = vmatprep.subr.bf16.mxu0 0
    %1593 = vmatpush1.bf16.msra.mxu0 %v1055
    %1594 = vmatprep.subr.bf16.mxu0 0
    %1595 = vmatpush1.bf16.msra.mxu0 %v1052
    %1596 = vmatprep.subr.bf16.mxu0 0
    %1597 = vmatpush1.bf16.msra.mxu0 %v1049
    %1598 = vmatprep.subr.bf16.mxu0 0
    %1599 = vmatpush1.bf16.msra.mxu0 %v1046
    %1600 = vmatprep.subr.bf16.mxu0 0
    %1601 = vmatpush2.bf16.msra.mxu0 %v1091
    %1602 = vmatprep.subr.bf16.mxu0 0
    %1603 = vmatpush2.bf16.msra.mxu0 %v1088
    %1604 = vmatprep.subr.bf16.mxu0 0
    %1605 = vmatpush2.bf16.msra.mxu0 %v1085
    %1606 = vmatprep.subr.bf16.mxu0 0
    %1607 = vmatpush2.bf16.msra.mxu0 %v1082
    %1608 = vmatprep.subr.bf16.mxu0 0
    %1609 = vmatpush2.bf16.msra.mxu0 %v1079
    %1610 = vmatprep.subr.bf16.mxu0 0
    %1611 = vmatpush2.bf16.msra.mxu0 %v1076
    %1612 = vmatprep.subr.bf16.mxu0 0
    %1613 = vmatpush2.bf16.msra.mxu0 %v1073
    %1614 = vmatprep.subr.bf16.mxu0 0
    %1615 = vmatpush2.bf16.msra.mxu0 %v1070
    %1616 = vmatprep.mubr.bf16.mxu0 %v343
    %1617 = vmatmul.mubr.bf16.gmra.mxu0 %v342
    %v1618 = vpop.f32.mrf.mxu0
    %v1619 = vadd.f32 %v1579, %v1618
    %v1620 = vpop.f32.mrf.mxu0
    %v1621 = vpop.f32.mrf.mxu0
    %v1622 = vpop.f32.mrf.mxu0
    %1623 = vdwg.mxu0
    %1624 = vmatprep.subr.bf16.mxu0 0
    %1625 = vmatpush1.bf16.msra.mxu0 %v1115
    %1626 = vmatprep.subr.bf16.mxu0 0
    %1627 = vmatpush1.bf16.msra.mxu0 %v1112
    %1628 = vmatprep.subr.bf16.mxu0 0
    %1629 = vmatpush1.bf16.msra.mxu0 %v1109
    %1630 = vmatprep.subr.bf16.mxu0 0
    %1631 = vmatpush1.bf16.msra.mxu0 %v1106
    %1632 = vmatprep.subr.bf16.mxu0 0
    %1633 = vmatpush1.bf16.msra.mxu0 %v1103
    %1634 = vmatprep.subr.bf16.mxu0 0
    %1635 = vmatpush1.bf16.msra.mxu0 %v1100
    %1636 = vmatprep.subr.bf16.mxu0 0
    %1637 = vmatpush1.bf16.msra.mxu0 %v1097
    %1638 = vmatprep.subr.bf16.mxu0 0
    %1639 = vmatpush1.bf16.msra.mxu0 %v1094
    %1640 = vmatprep.subr.bf16.mxu0 0
    %1641 = vmatpush2.bf16.msra.mxu0 %v1139
    %1642 = vmatprep.subr.bf16.mxu0 0
    %1643 = vmatpush2.bf16.msra.mxu0 %v1136
    %1644 = vmatprep.subr.bf16.mxu0 0
    %1645 = vmatpush2.bf16.msra.mxu0 %v1133
    %1646 = vmatprep.subr.bf16.mxu0 0
    %1647 = vmatpush2.bf16.msra.mxu0 %v1130
    %1648 = vmatprep.subr.bf16.mxu0 0
    %1649 = vmatpush2.bf16.msra.mxu0 %v1127
    %1650 = vmatprep.subr.bf16.mxu0 0
    %1651 = vmatpush2.bf16.msra.mxu0 %v1124
    %1652 = vmatprep.subr.bf16.mxu0 0
    %1653 = vmatpush2.bf16.msra.mxu0 %v1121
    %1654 = vmatprep.subr.bf16.mxu0 0
    %1655 = vmatpush2.bf16.msra.mxu0 %v1118
    %1656 = vmatprep.mubr.bf16.mxu0 %v345
    %1657 = vmatmul.mubr.bf16.gmra.mxu0 %v344
    %v1658 = vpop.f32.mrf.mxu0
    %v1659 = vadd.f32 %v1619, %v1658
    %v1660 = vpop.f32.mrf.mxu0
    %v1661 = vpop.f32.mrf.mxu0
    %v1662 = vpop.f32.mrf.mxu0
    %1663 = vdwg.mxu0
    %1664 = vmatprep.subr.bf16.mxu0 0
    %1665 = vmatpush1.bf16.msra.mxu0 %v1163
    %1666 = vmatprep.subr.bf16.mxu0 0
    %1667 = vmatpush1.bf16.msra.mxu0 %v1160
    %1668 = vmatprep.subr.bf16.mxu0 0
    %1669 = vmatpush1.bf16.msra.mxu0 %v1157
    %1670 = vmatprep.subr.bf16.mxu0 0
    %1671 = vmatpush1.bf16.msra.mxu0 %v1154
    %1672 = vmatprep.subr.bf16.mxu0 0
    %1673 = vmatpush1.bf16.msra.mxu0 %v1151
    %1674 = vmatprep.subr.bf16.mxu0 0
    %1675 = vmatpush1.bf16.msra.mxu0 %v1148
    %1676 = vmatprep.subr.bf16.mxu0 0
    %1677 = vmatpush1.bf16.msra.mxu0 %v1145
    %1678 = vmatprep.subr.bf16.mxu0 0
    %1679 = vmatpush1.bf16.msra.mxu0 %v1142
    %1680 = vmatprep.subr.bf16.mxu0 0
    %1681 = vmatpush2.bf16.msra.mxu0 %v1187
    %1682 = vmatprep.subr.bf16.mxu0 0
    %1683 = vmatpush2.bf16.msra.mxu0 %v1184
    %1684 = vmatprep.subr.bf16.mxu0 0
    %1685 = vmatpush2.bf16.msra.mxu0 %v1181
    %1686 = vmatprep.subr.bf16.mxu0 0
    %1687 = vmatpush2.bf16.msra.mxu0 %v1178
    %1688 = vmatprep.subr.bf16.mxu0 0
    %1689 = vmatpush2.bf16.msra.mxu0 %v1175
    %1690 = vmatprep.subr.bf16.mxu0 0
    %1691 = vmatpush2.bf16.msra.mxu0 %v1172
    %1692 = vmatprep.subr.bf16.mxu0 0
    %1693 = vmatpush2.bf16.msra.mxu0 %v1169
    %1694 = vmatprep.subr.bf16.mxu0 0
    %1695 = vmatpush2.bf16.msra.mxu0 %v1166
    %1696 = vmatprep.mubr.bf16.mxu0 %v347
    %1697 = vmatmul.mubr.bf16.gmra.mxu0 %v346
    %v1698 = vpop.f32.mrf.mxu0
    %v1699 = vadd.f32 %v1659, %v1698
    %v1700 = vpop.f32.mrf.mxu0
    %v1701 = vpop.f32.mrf.mxu0
    %v1702 = vpop.f32.mrf.mxu0
    %1703 = vdwg.mxu0
    %v1704 = vmax.f32 %v1538, 0.0
    %v1705 = vmax.f32 %v1540, 0.0
    %v1706 = vmax.f32 %v1699, 0.0
    %1707 = vst [vmem:[%s6] sm:$0xff] %v1704
    %1708 = vst [vmem:[%s6 + $0x8] sm:$0xff] %v1705
    %1709 = vst [vmem:[%s6 + $0x10] sm:$0xff] %v1706
    %v1710 = vpack.c.bf16 %v1704, %v1704
    %v1711 = vpack.c.bf16 %v1705, %v1705
    %v1712 = vpack.c.bf16 %v1706, %v1706
    %v1713 = vld [vmem:[#allocation4] sm:$0xf]
    %v1714 = vld [vmem:[#allocation4 + $0x4] sm:$0xf]
    %v1715 = vld [vmem:[#allocation4 + $0x8] sm:$0xf]
    %v1716 = vld [vmem:[#allocation4 + $0xc] sm:$0xf]
    %v1717 = vld [vmem:[#allocation4 + $0x10] sm:$0xf]
    %v1718 = vld [vmem:[#allocation4 + $0x14] sm:$0xf]
    %v1719 = vld [vmem:[#allocation4 + $0x18] sm:$0xf]
    %v1720 = vld [vmem:[#allocation4 + $0x1c] sm:$0xf]
    %v1721 = vld [vmem:[#allocation4 + $0x20] sm:$0xf]
    %v1722 = vld [vmem:[#allocation4 + $0x24] sm:$0xf]
    %v1723 = vld [vmem:[#allocation4 + $0x28] sm:$0xf]
    %v1724 = vld [vmem:[#allocation4 + $0x2c] sm:$0xf]
    %v1725 = vld [vmem:[#allocation4 + $0x30] sm:$0xf]
    %v1726 = vld [vmem:[#allocation4 + $0x34] sm:$0xf]
    %v1727 = vld [vmem:[#allocation4 + $0x38] sm:$0xf]
    %v1728 = vld [vmem:[#allocation4 + $0x3c] sm:$0xf]
    %v1729 = vld [vmem:[#allocation4 + $0x40] sm:$0xf]
    %v1730 = vld [vmem:[#allocation4 + $0x44] sm:$0xf]
    %v1731 = vld [vmem:[#allocation4 + $0x48] sm:$0xf]
    %v1732 = vld [vmem:[#allocation4 + $0x4c] sm:$0xf]
    %v1733 = vld [vmem:[#allocation4 + $0x50] sm:$0xf]
    %v1734 = vld [vmem:[#allocation4 + $0x54] sm:$0xf]
    %v1735 = vld [vmem:[#allocation4 + $0x58] sm:$0xf]
    %v1736 = vld [vmem:[#allocation4 + $0x5c] sm:$0xf]
    %v1737 = vld [vmem:[#allocation4 + $0x60] sm:$0xf]
    %v1738 = vld [vmem:[#allocation4 + $0x64] sm:$0xf]
    %v1739 = vld [vmem:[#allocation4 + $0x68] sm:$0xf]
    %v1740 = vld [vmem:[#allocation4 + $0x6c] sm:$0xf]
    %v1741 = vld [vmem:[#allocation4 + $0x70] sm:$0xf]
    %v1742 = vld [vmem:[#allocation4 + $0x74] sm:$0xf]
    %v1743 = vld [vmem:[#allocation4 + $0x78] sm:$0xf]
    %v1744 = vld [vmem:[#allocation4 + $0x7c] sm:$0xf]
    %v1745 = vld [vmem:[#allocation4 + $0x80] sm:$0xf]
    %v1746 = vld [vmem:[#allocation4 + $0x84] sm:$0xf]
    %v1747 = vld [vmem:[#allocation4 + $0x88] sm:$0xf]
    %v1748 = vld [vmem:[#allocation4 + $0x8c] sm:$0xf]
    %v1749 = vld [vmem:[#allocation4 + $0x90] sm:$0xf]
    %v1750 = vld [vmem:[#allocation4 + $0x94] sm:$0xf]
    %v1751 = vld [vmem:[#allocation4 + $0x98] sm:$0xf]
    %v1752 = vld [vmem:[#allocation4 + $0x9c] sm:$0xf]
    %v1753 = vld [vmem:[#allocation4 + $0xa0] sm:$0xf]
    %v1754 = vld [vmem:[#allocation4 + $0xa4] sm:$0xf]
    %v1755 = vld [vmem:[#allocation4 + $0xa8] sm:$0xf]
    %v1756 = vld [vmem:[#allocation4 + $0xac] sm:$0xf]
    %v1757 = vld [vmem:[#allocation4 + $0xb0] sm:$0xf]
    %v1758 = vld [vmem:[#allocation4 + $0xb4] sm:$0xf]
    %v1759 = vld [vmem:[#allocation4 + $0xb8] sm:$0xf]
    %v1760 = vld [vmem:[#allocation4 + $0xbc] sm:$0xf]
    %v1761 = vld [vmem:[%s4] sm:$0x1]
    %v1763 = vlaneseq
    %v1764 = vshrl.u32 %v1763, 7
    %v1765 = vsub.s32 0, %v1764
    %v1766 = vrot.slane %v1761, %v1765
    %v1816 = vunpack.c.l.b16 %v1713
    %v1817 = vunpack.c.l.b16 %v1714
    %v1818 = vunpack.c.l.b16 %v1715
    %v1819 = vunpack.c.l.b16 %v1716
    %v1820 = vunpack.c.l.b16 %v1717
    %v1821 = vunpack.c.l.b16 %v1718
    %v1822 = vunpack.c.l.b16 %v1719
    %v1823 = vunpack.c.l.b16 %v1720
    %v1824 = vunpack.c.l.b16 %v1721
    %v1825 = vunpack.c.l.b16 %v1722
    %v1826 = vunpack.c.l.b16 %v1723
    %v1827 = vunpack.c.l.b16 %v1724
    %v1828 = vunpack.c.l.b16 %v1725
    %v1829 = vunpack.c.l.b16 %v1726
    %v1830 = vunpack.c.l.b16 %v1727
    %v1831 = vunpack.c.l.b16 %v1728
    %v1832 = vunpack.c.l.b16 %v1729
    %v1833 = vunpack.c.l.b16 %v1730
    %v1834 = vunpack.c.l.b16 %v1731
    %v1835 = vunpack.c.l.b16 %v1732
    %v1836 = vunpack.c.l.b16 %v1733
    %v1837 = vunpack.c.l.b16 %v1734
    %v1838 = vunpack.c.l.b16 %v1735
    %v1839 = vunpack.c.l.b16 %v1736
    %v1840 = vunpack.c.l.b16 %v1737
    %v1841 = vunpack.c.l.b16 %v1738
    %v1842 = vunpack.c.l.b16 %v1739
    %v1843 = vunpack.c.l.b16 %v1740
    %v1844 = vunpack.c.l.b16 %v1741
    %v1845 = vunpack.c.l.b16 %v1742
    %v1846 = vunpack.c.l.b16 %v1743
    %v1847 = vunpack.c.l.b16 %v1744
    %v1848 = vunpack.c.l.b16 %v1745
    %v1849 = vunpack.c.l.b16 %v1746
    %v1850 = vunpack.c.l.b16 %v1747
    %v1851 = vunpack.c.l.b16 %v1748
    %v1852 = vunpack.c.l.b16 %v1749
    %v1853 = vunpack.c.l.b16 %v1750
    %v1854 = vunpack.c.l.b16 %v1751
    %v1855 = vunpack.c.l.b16 %v1752
    %v1856 = vunpack.c.l.b16 %v1753
    %v1857 = vunpack.c.l.b16 %v1754
    %v1858 = vunpack.c.l.b16 %v1755
    %v1859 = vunpack.c.l.b16 %v1756
    %v1860 = vunpack.c.l.b16 %v1757
    %v1861 = vunpack.c.l.b16 %v1758
    %v1862 = vunpack.c.l.b16 %v1759
    %v1863 = vunpack.c.l.b16 %v1760
    %v1864 = vpack.c.b16 %v1817, %v1816
    %v1865 = vpack.c.b16 %v1819, %v1818
    %v1866 = vpack.c.b16 %v1821, %v1820
    %v1867 = vpack.c.b16 %v1823, %v1822
    %v1868 = vpack.c.b16 %v1825, %v1824
    %v1869 = vpack.c.b16 %v1827, %v1826
    %v1870 = vpack.c.b16 %v1829, %v1828
    %v1871 = vpack.c.b16 %v1831, %v1830
    %v1872 = vpack.c.b16 %v1833, %v1832
    %v1873 = vpack.c.b16 %v1835, %v1834
    %v1874 = vpack.c.b16 %v1837, %v1836
    %v1875 = vpack.c.b16 %v1839, %v1838
    %v1876 = vpack.c.b16 %v1841, %v1840
    %v1877 = vpack.c.b16 %v1843, %v1842
    %v1878 = vpack.c.b16 %v1845, %v1844
    %v1879 = vpack.c.b16 %v1847, %v1846
    %v1880 = vpack.c.b16 %v1849, %v1848
    %v1881 = vpack.c.b16 %v1851, %v1850
    %v1882 = vpack.c.b16 %v1853, %v1852
    %v1883 = vpack.c.b16 %v1855, %v1854
    %v1884 = vpack.c.b16 %v1857, %v1856
    %v1885 = vpack.c.b16 %v1859, %v1858
    %v1886 = vpack.c.b16 %v1861, %v1860
    %v1887 = vpack.c.b16 %v1863, %v1862
    %1912 = vmatprep.subr.bf16.mxu0 0
    %1913 = vmatpush1.bf16.msra.mxu0 %v1871
    %1914 = vmatprep.subr.bf16.mxu0 0
    %1915 = vmatpush1.bf16.msra.mxu0 %v1870
    %1916 = vmatprep.subr.bf16.mxu0 0
    %1917 = vmatpush1.bf16.msra.mxu0 %v1869
    %1918 = vmatprep.subr.bf16.mxu0 0
    %1919 = vmatpush1.bf16.msra.mxu0 %v1868
    %1920 = vmatprep.subr.bf16.mxu0 0
    %1921 = vmatpush1.bf16.msra.mxu0 %v1867
    %1922 = vmatprep.subr.bf16.mxu0 0
    %1923 = vmatpush1.bf16.msra.mxu0 %v1866
    %1924 = vmatprep.subr.bf16.mxu0 0
    %1925 = vmatpush1.bf16.msra.mxu0 %v1865
    %1926 = vmatprep.subr.bf16.mxu0 0
    %1927 = vmatpush1.bf16.msra.mxu0 %v1864
    %1928 = vmatprep.subr.bf16.mxu0 0
    %1929 = vmatpush2.bf16.msra.mxu0 %v1879
    %1930 = vmatprep.subr.bf16.mxu0 0
    %1931 = vmatpush2.bf16.msra.mxu0 %v1878
    %1932 = vmatprep.subr.bf16.mxu0 0
    %1933 = vmatpush2.bf16.msra.mxu0 %v1877
    %1934 = vmatprep.subr.bf16.mxu0 0
    %1935 = vmatpush2.bf16.msra.mxu0 %v1876
    %1936 = vmatprep.subr.bf16.mxu0 0
    %1937 = vmatpush2.bf16.msra.mxu0 %v1875
    %1938 = vmatprep.subr.bf16.mxu0 0
    %1939 = vmatpush2.bf16.msra.mxu0 %v1874
    %1940 = vmatprep.subr.bf16.mxu0 0
    %1941 = vmatpush2.bf16.msra.mxu0 %v1873
    %1942 = vmatprep.subr.bf16.mxu0 0
    %1943 = vmatpush2.bf16.msra.mxu0 %v1872
    %1944 = vmatprep.mubr.bf16.mxu0 %v1711
    %1945 = vmatmul.mubr.bf16.gmra.mxu0 %v1710
    %v1946 = vpop.f32.mrf.mxu0
    %v1947 = vadd.f32 %v1766, %v1946
    %v1948 = vpop.f32.mrf.mxu0
    %v1949 = vpop.f32.mrf.mxu0
    %v1950 = vpop.f32.mrf.mxu0
    %1951 = vdwg.mxu0
    %1952 = vmatprep.subr.bf16.mxu0 0
    %1953 = vmatpush1.bf16.msra.mxu0 %v1887
    %1954 = vmatprep.subr.bf16.mxu0 0
    %1955 = vmatpush1.bf16.msra.mxu0 %v1886
    %1956 = vmatprep.subr.bf16.mxu0 0
    %1957 = vmatpush1.bf16.msra.mxu0 %v1885
    %1958 = vmatprep.subr.bf16.mxu0 0
    %1959 = vmatpush1.bf16.msra.mxu0 %v1884
    %1960 = vmatprep.subr.bf16.mxu0 0
    %1961 = vmatpush1.bf16.msra.mxu0 %v1883
    %1962 = vmatprep.subr.bf16.mxu0 0
    %1963 = vmatpush1.bf16.msra.mxu0 %v1882
    %1964 = vmatprep.subr.bf16.mxu0 0
    %1965 = vmatpush1.bf16.msra.mxu0 %v1881
    %1966 = vmatprep.subr.bf16.mxu0 0
    %1967 = vmatpush1.bf16.msra.mxu0 %v1880
    %1968 = vmatprep.subr.bf16.mxu0 0
    %1969 = vmatpush2.bf16.msra.mxu0 0
    %1970 = vmatprep.subr.bf16.mxu0 0
    %1971 = vmatpush2.bf16.msra.mxu0 0
    %1972 = vmatprep.subr.bf16.mxu0 0
    %1973 = vmatpush2.bf16.msra.mxu0 0
    %1974 = vmatprep.subr.bf16.mxu0 0
    %1975 = vmatpush2.bf16.msra.mxu0 0
    %1976 = vmatprep.subr.bf16.mxu0 0
    %1977 = vmatpush2.bf16.msra.mxu0 0
    %1978 = vmatprep.subr.bf16.mxu0 0
    %1979 = vmatpush2.bf16.msra.mxu0 0
    %1980 = vmatprep.subr.bf16.mxu0 0
    %1981 = vmatpush2.bf16.msra.mxu0 0
    %1982 = vmatprep.subr.bf16.mxu0 0
    %1983 = vmatpush2.bf16.msra.mxu0 0
    %1984 = vmatprep.mubr.bf16.mxu0 0
    %1985 = vmatmul.mubr.bf16.gmra.mxu0 %v1712
    %v1986 = vpop.f32.mrf.mxu0
    %v1987 = vadd.f32 %v1947, %v1986
    %v1988 = vpop.f32.mrf.mxu0
    %v1989 = vpop.f32.mrf.mxu0
    %v1990 = vpop.f32.mrf.mxu0
    %1991 = vdwg.mxu0
    %1992 = vst [vmem:[%s5] sm:$0xff] %v1987
    // Predicated region
    $region30: #{mlp_forward.1} parent=1 // pred_check
      _
    $region31: #{mlp_forward.1} parent=1 // pred_check_branch
      %1994 = sbr.rel (0) target = $region33
    $region32: #{mlp_forward.1} parent=1 // pred_region
      _
    $region33: #{mlp_forward.1} parent=1 // pred_fallthru
      _
    // Predicated region
    $region34: #{mlp_forward.1} parent=1 // pred_check
      _
    $region35: #{mlp_forward.1} parent=1 // pred_check_branch
      %1996 = sbr.rel (0) target = $region37
    $region36: #{mlp_forward.1} parent=1 // pred_region
      _
    $region37: #{mlp_forward.1} parent=1 // pred_fallthru
      _
    // Predicated region
    $region38: #{mlp_forward.1} parent=1 // pred_check
      _
    $region39: #{mlp_forward.1} parent=1 // pred_check_branch
      %1998 = sbr.rel (0) target = $region41
    $region40: #{mlp_forward.1} parent=1 // pred_region
      _
    $region41: #{mlp_forward.1} parent=1 // pred_fallthru
      _
    // Predicated region
    $region42: #{mlp_forward.1} parent=1 // pred_check
      _
    $region43: #{mlp_forward.1} parent=1 // pred_check_branch
      %2000 = sbr.rel (0) target = $region45
    $region44: #{mlp_forward.1} parent=1 // pred_region
      _
    $region45: #{mlp_forward.1} parent=1 // pred_fallthru
      _
    %2001 = vsyncpa [#allocation3], 1
    %2002 = vsyncpa [#allocation5], 1

</llo_original>
